<compile_context>
chip_gen: v7x
topology: tpu7x:2x2x1
jax: 0.10.0
libtpu: 0.0.40
codegen_flags: <defaults>
</compile_context>

<pallas_src>
import functools

import jax
import jax.numpy as jnp
from jax import lax
from jax.experimental import pallas as pl
from jax.experimental.pallas import tpu as pltpu


def _dwsep_kernel(wdw_ref, wpw_ref, xf_ref, o_ref, *, C, K, Wp, Lout):
    # wdw_ref: (C, K*K) f32 depthwise weights            (VMEM)
    # wpw_ref: (O, C)   f32 pointwise weights            (VMEM)
    # xf_ref:  (1, C, Lpad) flattened padded input       (VMEM)
    # o_ref:   (1, O, Lout) lane-dense output, Lout = Ho*Wp
    wdw = wdw_ref[...].astype(jnp.float32)                    # (C, K*K)

    # --- depthwise KxK conv, vectorized across channels ---
    # K*K broadcasted FMAs on a lane-dense (C, Ho*Wp) accumulator; each tap is
    # a single contiguous slice of the flattened padded image.
    acc = jnp.zeros((C, Lout), jnp.float32)
    for kh in range(K):
        for kw in range(K):
            off = kh * Wp + kw                                # static offset
            w = wdw[:, kh * K + kw][:, None]                  # (C, 1)
            acc = acc + w * xf_ref[0, :, off:off + Lout]      # (C, Lout)

    # --- pointwise 1x1 conv: one MXU matmul, f32 accumulate ---
    out = jnp.dot(wpw_ref[...].astype(jnp.float32), acc,
                  preferred_element_type=jnp.float32,
                  precision=lax.Precision.HIGHEST)            # (O, Lout)
    o_ref[0, :, :] = out.astype(o_ref.dtype)                  # one dense store


def depthwise_separable_conv(x, w_dw, w_pw, *, kernel_size=5, padding=2):
    """x: (N, Cin, H, W); w_dw: (Cin, 1, K, K); w_pw: (Cout, Cin, 1, 1)."""
    N, C, H, W = x.shape
    O = w_pw.shape[0]
    K = kernel_size

    Hp, Wp = H + 2 * padding, W + 2 * padding
    Ho, Wo = Hp - K + 1, Wp - K + 1          # output size (general padding)
    Lout = Ho * Wp                           # padded-stride output row length

    # Zero-pad spatially, flatten (Hp, Wp) with the padded row stride, then pad
    # the flat axis to a lane-tile multiple so every tap slice stays in bounds.
    x_pad = jnp.pad(x, ((0, 0), (0, 0), (padding, padding), (padding, padding)))
    need = (K - 1) * Wp + (K - 1) + Lout
    Lpad = ((need + 127) // 128) * 128
    xf = jnp.pad(x_pad.reshape(N, C, Hp * Wp),
                 ((0, 0), (0, 0), (0, Lpad - Hp * Wp)))

    wdw2d = w_dw.reshape(C, K * K).astype(jnp.float32)        # (C, K*K)
    wpw2d = w_pw.reshape(O, C).astype(jnp.float32)            # (O, C)

    kernel = functools.partial(_dwsep_kernel, C=C, K=K, Wp=Wp, Lout=Lout)

    out_flat = pl.pallas_call(
        kernel,
        out_shape=jax.ShapeDtypeStruct((N, O, Lout), x.dtype),
        grid=(N,),
        in_specs=[
            pl.BlockSpec((C, K * K), lambda n: (0, 0)),       # depthwise w (VMEM)
            pl.BlockSpec((O, C), lambda n: (0, 0)),           # pointwise w (VMEM)
            pl.BlockSpec((1, C, Lpad), lambda n: (n, 0, 0)),  # flattened input
        ],
        out_specs=pl.BlockSpec((1, O, Lout), lambda n: (n, 0, 0)),
        compiler_params=pltpu.CompilerParams(
            dimension_semantics=("parallel",)),
    )(wdw2d, wpw2d, xf)

    # Drop the garbage columns (w >= Wo) produced by the padded-stride layout.
    return out_flat.reshape(N, O, Ho, Wp)[:, :, :, :Wo]


def _reference(x, w_dw, w_pw, *, padding=2):
    """Plain-JAX reference matching torch.nn.Conv2d semantics."""
    C = x.shape[1]
    dn = ("NCHW", "OIHW", "NCHW")
    dw = lax.conv_general_dilated(
        x, w_dw, window_strides=(1, 1),
        padding=((padding, padding), (padding, padding)),
        dimension_numbers=dn, feature_group_count=C,
        precision=lax.Precision.HIGHEST)
    pw = lax.conv_general_dilated(
        dw, w_pw, window_strides=(1, 1), padding=((0, 0), (0, 0)),
        dimension_numbers=dn, precision=lax.Precision.HIGHEST)
    return pw


if __name__ == "__main__":
    nin, nout, K = 4, 8, 5
    key = jax.random.PRNGKey(0)
    k1, k2, k3 = jax.random.split(key, 3)

    x = jax.random.normal(k1, (2, nin, 16, 16), dtype=jnp.float32)
    # Deterministic synthetic weights (shapes from the PyTorch module __init__).
    w_dw = jax.random.normal(k2, (nin, 1, K, K), dtype=jnp.float32) * 0.1
    w_pw = jax.random.normal(k3, (nout, nin, 1, 1), dtype=jnp.float32) * 0.1

    out = depthwise_separable_conv(x, w_dw, w_pw, kernel_size=K, padding=2)
    out = jax.block_until_ready(out)

    ref = _reference(x, w_dw, w_pw, padding=2)
    assert out.shape == (2, nout, 16, 16), out.shape
    assert jnp.allclose(out, ref, atol=1e-3, rtol=1e-3), "mismatch vs reference"

    print("KERNEL_OK")
</pallas_src>

<mosaic_0001>
module attributes {stable_mosaic.version = 11 : i64} {
  func.func @_dwsep_kernel(%arg0: i32, %arg1: memref<4x25xf32, #tpu.memory_space<vmem>>, %arg2: memref<8x4xf32, #tpu.memory_space<vmem>>, %arg3: memref<1x4x512xf32, #tpu.memory_space<vmem>>, %arg4: memref<1x8x320xf32, #tpu.memory_space<vmem>>) attributes {dimension_semantics = [#tpu.dimension_semantics<parallel>], iteration_bounds = array<i64: 2>, scalar_prefetch = 0 : i64, scratch_operands = 0 : i64, tpu.core_type = #tpu.core_type<tc>, window_params = [{pipeline_mode = #tpu.pipeline_mode<synchronous>, transform_indices = @transform_0, window_bounds = array<i64: 4, 25>}, {pipeline_mode = #tpu.pipeline_mode<synchronous>, transform_indices = @transform_1, window_bounds = array<i64: 8, 4>}, {transform_indices = @transform_2, window_bounds = array<i64: 1, 4, 512>}, {transform_indices = @transform_3, window_bounds = array<i64: 1, 8, 320>}]} {
    %c0 = arith.constant 0 : index
    %c0_0 = arith.constant 0 : index
    %0 = vector.load %arg1[%c0, %c0_0] : memref<4x25xf32, #tpu.memory_space<vmem>>, vector<4x25xf32>
    %cst = arith.constant 0.000000e+00 : f32
    %1 = vector.broadcast %cst : f32 to vector<4x320xf32>
    %2 = vector.extract_strided_slice %0 {offsets = [0, 0], sizes = [4, 1], strides = [1, 1]} : vector<4x25xf32> to vector<4x1xf32>
    %3 = vector.shape_cast %2 : vector<4x1xf32> to vector<4xf32>
    %4 = vector.shape_cast %3 : vector<4xf32> to vector<4x1xf32>
    %c0_1 = arith.constant 0 : index
    %c0_2 = arith.constant 0 : index
    %c0_3 = arith.constant 0 : index
    %5 = vector.load %arg3[%c0_1, %c0_2, %c0_3] : memref<1x4x512xf32, #tpu.memory_space<vmem>>, vector<1x4x320xf32>
    %6 = vector.shape_cast %5 : vector<1x4x320xf32> to vector<4x320xf32>
    %7 = vector.broadcast %4 : vector<4x1xf32> to vector<4x320xf32>
    %8 = arith.mulf %7, %6 : vector<4x320xf32>
    %9 = arith.addf %1, %8 : vector<4x320xf32>
    %10 = vector.extract_strided_slice %0 {offsets = [0, 1], sizes = [4, 1], strides = [1, 1]} : vector<4x25xf32> to vector<4x1xf32>
    %11 = vector.shape_cast %10 : vector<4x1xf32> to vector<4xf32>
    %12 = vector.shape_cast %11 : vector<4xf32> to vector<4x1xf32>
    %c0_4 = arith.constant 0 : index
    %c0_5 = arith.constant 0 : index
    %c1 = arith.constant 1 : index
    %13 = vector.load %arg3[%c0_4, %c0_5, %c1] : memref<1x4x512xf32, #tpu.memory_space<vmem>>, vector<1x4x320xf32>
    %14 = vector.shape_cast %13 : vector<1x4x320xf32> to vector<4x320xf32>
    %15 = vector.broadcast %12 : vector<4x1xf32> to vector<4x320xf32>
    %16 = arith.mulf %15, %14 : vector<4x320xf32>
    %17 = arith.addf %9, %16 : vector<4x320xf32>
    %18 = vector.extract_strided_slice %0 {offsets = [0, 2], sizes = [4, 1], strides = [1, 1]} : vector<4x25xf32> to vector<4x1xf32>
    %19 = vector.shape_cast %18 : vector<4x1xf32> to vector<4xf32>
    %20 = vector.shape_cast %19 : vector<4xf32> to vector<4x1xf32>
    %c0_6 = arith.constant 0 : index
    %c0_7 = arith.constant 0 : index
    %c2 = arith.constant 2 : index
    %21 = vector.load %arg3[%c0_6, %c0_7, %c2] : memref<1x4x512xf32, #tpu.memory_space<vmem>>, vector<1x4x320xf32>
    %22 = vector.shape_cast %21 : vector<1x4x320xf32> to vector<4x320xf32>
    %23 = vector.broadcast %20 : vector<4x1xf32> to vector<4x320xf32>
    %24 = arith.mulf %23, %22 : vector<4x320xf32>
    %25 = arith.addf %17, %24 : vector<4x320xf32>
    %26 = vector.extract_strided_slice %0 {offsets = [0, 3], sizes = [4, 1], strides = [1, 1]} : vector<4x25xf32> to vector<4x1xf32>
    %27 = vector.shape_cast %26 : vector<4x1xf32> to vector<4xf32>
    %28 = vector.shape_cast %27 : vector<4xf32> to vector<4x1xf32>
    %c0_8 = arith.constant 0 : index
    %c0_9 = arith.constant 0 : index
    %c3 = arith.constant 3 : index
    %29 = vector.load %arg3[%c0_8, %c0_9, %c3] : memref<1x4x512xf32, #tpu.memory_space<vmem>>, vector<1x4x320xf32>
    %30 = vector.shape_cast %29 : vector<1x4x320xf32> to vector<4x320xf32>
    %31 = vector.broadcast %28 : vector<4x1xf32> to vector<4x320xf32>
    %32 = arith.mulf %31, %30 : vector<4x320xf32>
    %33 = arith.addf %25, %32 : vector<4x320xf32>
    %34 = vector.extract_strided_slice %0 {offsets = [0, 4], sizes = [4, 1], strides = [1, 1]} : vector<4x25xf32> to vector<4x1xf32>
    %35 = vector.shape_cast %34 : vector<4x1xf32> to vector<4xf32>
    %36 = vector.shape_cast %35 : vector<4xf32> to vector<4x1xf32>
    %c0_10 = arith.constant 0 : index
    %c0_11 = arith.constant 0 : index
    %c4 = arith.constant 4 : index
    %37 = vector.load %arg3[%c0_10, %c0_11, %c4] : memref<1x4x512xf32, #tpu.memory_space<vmem>>, vector<1x4x320xf32>
    %38 = vector.shape_cast %37 : vector<1x4x320xf32> to vector<4x320xf32>
    %39 = vector.broadcast %36 : vector<4x1xf32> to vector<4x320xf32>
    %40 = arith.mulf %39, %38 : vector<4x320xf32>
    %41 = arith.addf %33, %40 : vector<4x320xf32>
    %42 = vector.extract_strided_slice %0 {offsets = [0, 5], sizes = [4, 1], strides = [1, 1]} : vector<4x25xf32> to vector<4x1xf32>
    %43 = vector.shape_cast %42 : vector<4x1xf32> to vector<4xf32>
    %44 = vector.shape_cast %43 : vector<4xf32> to vector<4x1xf32>
    %c0_12 = arith.constant 0 : index
    %c0_13 = arith.constant 0 : index
    %c20 = arith.constant 20 : index
    %45 = vector.load %arg3[%c0_12, %c0_13, %c20] : memref<1x4x512xf32, #tpu.memory_space<vmem>>, vector<1x4x320xf32>
    %46 = vector.shape_cast %45 : vector<1x4x320xf32> to vector<4x320xf32>
    %47 = vector.broadcast %44 : vector<4x1xf32> to vector<4x320xf32>
    %48 = arith.mulf %47, %46 : vector<4x320xf32>
    %49 = arith.addf %41, %48 : vector<4x320xf32>
    %50 = vector.extract_strided_slice %0 {offsets = [0, 6], sizes = [4, 1], strides = [1, 1]} : vector<4x25xf32> to vector<4x1xf32>
    %51 = vector.shape_cast %50 : vector<4x1xf32> to vector<4xf32>
    %52 = vector.shape_cast %51 : vector<4xf32> to vector<4x1xf32>
    %c0_14 = arith.constant 0 : index
    %c0_15 = arith.constant 0 : index
    %c21 = arith.constant 21 : index
    %53 = vector.load %arg3[%c0_14, %c0_15, %c21] : memref<1x4x512xf32, #tpu.memory_space<vmem>>, vector<1x4x320xf32>
    %54 = vector.shape_cast %53 : vector<1x4x320xf32> to vector<4x320xf32>
    %55 = vector.broadcast %52 : vector<4x1xf32> to vector<4x320xf32>
    %56 = arith.mulf %55, %54 : vector<4x320xf32>
    %57 = arith.addf %49, %56 : vector<4x320xf32>
    %58 = vector.extract_strided_slice %0 {offsets = [0, 7], sizes = [4, 1], strides = [1, 1]} : vector<4x25xf32> to vector<4x1xf32>
    %59 = vector.shape_cast %58 : vector<4x1xf32> to vector<4xf32>
    %60 = vector.shape_cast %59 : vector<4xf32> to vector<4x1xf32>
    %c0_16 = arith.constant 0 : index
    %c0_17 = arith.constant 0 : index
    %c22 = arith.constant 22 : index
    %61 = vector.load %arg3[%c0_16, %c0_17, %c22] : memref<1x4x512xf32, #tpu.memory_space<vmem>>, vector<1x4x320xf32>
    %62 = vector.shape_cast %61 : vector<1x4x320xf32> to vector<4x320xf32>
    %63 = vector.broadcast %60 : vector<4x1xf32> to vector<4x320xf32>
    %64 = arith.mulf %63, %62 : vector<4x320xf32>
    %65 = arith.addf %57, %64 : vector<4x320xf32>
    %66 = vector.extract_strided_slice %0 {offsets = [0, 8], sizes = [4, 1], strides = [1, 1]} : vector<4x25xf32> to vector<4x1xf32>
    %67 = vector.shape_cast %66 : vector<4x1xf32> to vector<4xf32>
    %68 = vector.shape_cast %67 : vector<4xf32> to vector<4x1xf32>
    %c0_18 = arith.constant 0 : index
    %c0_19 = arith.constant 0 : index
    %c23 = arith.constant 23 : index
    %69 = vector.load %arg3[%c0_18, %c0_19, %c23] : memref<1x4x512xf32, #tpu.memory_space<vmem>>, vector<1x4x320xf32>
    %70 = vector.shape_cast %69 : vector<1x4x320xf32> to vector<4x320xf32>
    %71 = vector.broadcast %68 : vector<4x1xf32> to vector<4x320xf32>
    %72 = arith.mulf %71, %70 : vector<4x320xf32>
    %73 = arith.addf %65, %72 : vector<4x320xf32>
    %74 = vector.extract_strided_slice %0 {offsets = [0, 9], sizes = [4, 1], strides = [1, 1]} : vector<4x25xf32> to vector<4x1xf32>
    %75 = vector.shape_cast %74 : vector<4x1xf32> to vector<4xf32>
    %76 = vector.shape_cast %75 : vector<4xf32> to vector<4x1xf32>
    %c0_20 = arith.constant 0 : index
    %c0_21 = arith.constant 0 : index
    %c24 = arith.constant 24 : index
    %77 = vector.load %arg3[%c0_20, %c0_21, %c24] : memref<1x4x512xf32, #tpu.memory_space<vmem>>, vector<1x4x320xf32>
    %78 = vector.shape_cast %77 : vector<1x4x320xf32> to vector<4x320xf32>
    %79 = vector.broadcast %76 : vector<4x1xf32> to vector<4x320xf32>
    %80 = arith.mulf %79, %78 : vector<4x320xf32>
    %81 = arith.addf %73, %80 : vector<4x320xf32>
    %82 = vector.extract_strided_slice %0 {offsets = [0, 10], sizes = [4, 1], strides = [1, 1]} : vector<4x25xf32> to vector<4x1xf32>
    %83 = vector.shape_cast %82 : vector<4x1xf32> to vector<4xf32>
    %84 = vector.shape_cast %83 : vector<4xf32> to vector<4x1xf32>
    %c0_22 = arith.constant 0 : index
    %c0_23 = arith.constant 0 : index
    %c40 = arith.constant 40 : index
    %85 = vector.load %arg3[%c0_22, %c0_23, %c40] : memref<1x4x512xf32, #tpu.memory_space<vmem>>, vector<1x4x320xf32>
    %86 = vector.shape_cast %85 : vector<1x4x320xf32> to vector<4x320xf32>
    %87 = vector.broadcast %84 : vector<4x1xf32> to vector<4x320xf32>
    %88 = arith.mulf %87, %86 : vector<4x320xf32>
    %89 = arith.addf %81, %88 : vector<4x320xf32>
    %90 = vector.extract_strided_slice %0 {offsets = [0, 11], sizes = [4, 1], strides = [1, 1]} : vector<4x25xf32> to vector<4x1xf32>
    %91 = vector.shape_cast %90 : vector<4x1xf32> to vector<4xf32>
    %92 = vector.shape_cast %91 : vector<4xf32> to vector<4x1xf32>
    %c0_24 = arith.constant 0 : index
    %c0_25 = arith.constant 0 : index
    %c41 = arith.constant 41 : index
    %93 = vector.load %arg3[%c0_24, %c0_25, %c41] : memref<1x4x512xf32, #tpu.memory_space<vmem>>, vector<1x4x320xf32>
    %94 = vector.shape_cast %93 : vector<1x4x320xf32> to vector<4x320xf32>
    %95 = vector.broadcast %92 : vector<4x1xf32> to vector<4x320xf32>
    %96 = arith.mulf %95, %94 : vector<4x320xf32>
    %97 = arith.addf %89, %96 : vector<4x320xf32>
    %98 = vector.extract_strided_slice %0 {offsets = [0, 12], sizes = [4, 1], strides = [1, 1]} : vector<4x25xf32> to vector<4x1xf32>
    %99 = vector.shape_cast %98 : vector<4x1xf32> to vector<4xf32>
    %100 = vector.shape_cast %99 : vector<4xf32> to vector<4x1xf32>
    %c0_26 = arith.constant 0 : index
    %c0_27 = arith.constant 0 : index
    %c42 = arith.constant 42 : index
    %101 = vector.load %arg3[%c0_26, %c0_27, %c42] : memref<1x4x512xf32, #tpu.memory_space<vmem>>, vector<1x4x320xf32>
    %102 = vector.shape_cast %101 : vector<1x4x320xf32> to vector<4x320xf32>
    %103 = vector.broadcast %100 : vector<4x1xf32> to vector<4x320xf32>
    %104 = arith.mulf %103, %102 : vector<4x320xf32>
    %105 = arith.addf %97, %104 : vector<4x320xf32>
    %106 = vector.extract_strided_slice %0 {offsets = [0, 13], sizes = [4, 1], strides = [1, 1]} : vector<4x25xf32> to vector<4x1xf32>
    %107 = vector.shape_cast %106 : vector<4x1xf32> to vector<4xf32>
    %108 = vector.shape_cast %107 : vector<4xf32> to vector<4x1xf32>
    %c0_28 = arith.constant 0 : index
    %c0_29 = arith.constant 0 : index
    %c43 = arith.constant 43 : index
    %109 = vector.load %arg3[%c0_28, %c0_29, %c43] : memref<1x4x512xf32, #tpu.memory_space<vmem>>, vector<1x4x320xf32>
    %110 = vector.shape_cast %109 : vector<1x4x320xf32> to vector<4x320xf32>
    %111 = vector.broadcast %108 : vector<4x1xf32> to vector<4x320xf32>
    %112 = arith.mulf %111, %110 : vector<4x320xf32>
    %113 = arith.addf %105, %112 : vector<4x320xf32>
    %114 = vector.extract_strided_slice %0 {offsets = [0, 14], sizes = [4, 1], strides = [1, 1]} : vector<4x25xf32> to vector<4x1xf32>
    %115 = vector.shape_cast %114 : vector<4x1xf32> to vector<4xf32>
    %116 = vector.shape_cast %115 : vector<4xf32> to vector<4x1xf32>
    %c0_30 = arith.constant 0 : index
    %c0_31 = arith.constant 0 : index
    %c44 = arith.constant 44 : index
    %117 = vector.load %arg3[%c0_30, %c0_31, %c44] : memref<1x4x512xf32, #tpu.memory_space<vmem>>, vector<1x4x320xf32>
    %118 = vector.shape_cast %117 : vector<1x4x320xf32> to vector<4x320xf32>
    %119 = vector.broadcast %116 : vector<4x1xf32> to vector<4x320xf32>
    %120 = arith.mulf %119, %118 : vector<4x320xf32>
    %121 = arith.addf %113, %120 : vector<4x320xf32>
    %122 = vector.extract_strided_slice %0 {offsets = [0, 15], sizes = [4, 1], strides = [1, 1]} : vector<4x25xf32> to vector<4x1xf32>
    %123 = vector.shape_cast %122 : vector<4x1xf32> to vector<4xf32>
    %124 = vector.shape_cast %123 : vector<4xf32> to vector<4x1xf32>
    %c0_32 = arith.constant 0 : index
    %c0_33 = arith.constant 0 : index
    %c60 = arith.constant 60 : index
    %125 = vector.load %arg3[%c0_32, %c0_33, %c60] : memref<1x4x512xf32, #tpu.memory_space<vmem>>, vector<1x4x320xf32>
    %126 = vector.shape_cast %125 : vector<1x4x320xf32> to vector<4x320xf32>
    %127 = vector.broadcast %124 : vector<4x1xf32> to vector<4x320xf32>
    %128 = arith.mulf %127, %126 : vector<4x320xf32>
    %129 = arith.addf %121, %128 : vector<4x320xf32>
    %130 = vector.extract_strided_slice %0 {offsets = [0, 16], sizes = [4, 1], strides = [1, 1]} : vector<4x25xf32> to vector<4x1xf32>
    %131 = vector.shape_cast %130 : vector<4x1xf32> to vector<4xf32>
    %132 = vector.shape_cast %131 : vector<4xf32> to vector<4x1xf32>
    %c0_34 = arith.constant 0 : index
    %c0_35 = arith.constant 0 : index
    %c61 = arith.constant 61 : index
    %133 = vector.load %arg3[%c0_34, %c0_35, %c61] : memref<1x4x512xf32, #tpu.memory_space<vmem>>, vector<1x4x320xf32>
    %134 = vector.shape_cast %133 : vector<1x4x320xf32> to vector<4x320xf32>
    %135 = vector.broadcast %132 : vector<4x1xf32> to vector<4x320xf32>
    %136 = arith.mulf %135, %134 : vector<4x320xf32>
    %137 = arith.addf %129, %136 : vector<4x320xf32>
    %138 = vector.extract_strided_slice %0 {offsets = [0, 17], sizes = [4, 1], strides = [1, 1]} : vector<4x25xf32> to vector<4x1xf32>
    %139 = vector.shape_cast %138 : vector<4x1xf32> to vector<4xf32>
    %140 = vector.shape_cast %139 : vector<4xf32> to vector<4x1xf32>
    %c0_36 = arith.constant 0 : index
    %c0_37 = arith.constant 0 : index
    %c62 = arith.constant 62 : index
    %141 = vector.load %arg3[%c0_36, %c0_37, %c62] : memref<1x4x512xf32, #tpu.memory_space<vmem>>, vector<1x4x320xf32>
    %142 = vector.shape_cast %141 : vector<1x4x320xf32> to vector<4x320xf32>
    %143 = vector.broadcast %140 : vector<4x1xf32> to vector<4x320xf32>
    %144 = arith.mulf %143, %142 : vector<4x320xf32>
    %145 = arith.addf %137, %144 : vector<4x320xf32>
    %146 = vector.extract_strided_slice %0 {offsets = [0, 18], sizes = [4, 1], strides = [1, 1]} : vector<4x25xf32> to vector<4x1xf32>
    %147 = vector.shape_cast %146 : vector<4x1xf32> to vector<4xf32>
    %148 = vector.shape_cast %147 : vector<4xf32> to vector<4x1xf32>
    %c0_38 = arith.constant 0 : index
    %c0_39 = arith.constant 0 : index
    %c63 = arith.constant 63 : index
    %149 = vector.load %arg3[%c0_38, %c0_39, %c63] : memref<1x4x512xf32, #tpu.memory_space<vmem>>, vector<1x4x320xf32>
    %150 = vector.shape_cast %149 : vector<1x4x320xf32> to vector<4x320xf32>
    %151 = vector.broadcast %148 : vector<4x1xf32> to vector<4x320xf32>
    %152 = arith.mulf %151, %150 : vector<4x320xf32>
    %153 = arith.addf %145, %152 : vector<4x320xf32>
    %154 = vector.extract_strided_slice %0 {offsets = [0, 19], sizes = [4, 1], strides = [1, 1]} : vector<4x25xf32> to vector<4x1xf32>
    %155 = vector.shape_cast %154 : vector<4x1xf32> to vector<4xf32>
    %156 = vector.shape_cast %155 : vector<4xf32> to vector<4x1xf32>
    %c0_40 = arith.constant 0 : index
    %c0_41 = arith.constant 0 : index
    %c64 = arith.constant 64 : index
    %157 = vector.load %arg3[%c0_40, %c0_41, %c64] : memref<1x4x512xf32, #tpu.memory_space<vmem>>, vector<1x4x320xf32>
    %158 = vector.shape_cast %157 : vector<1x4x320xf32> to vector<4x320xf32>
    %159 = vector.broadcast %156 : vector<4x1xf32> to vector<4x320xf32>
    %160 = arith.mulf %159, %158 : vector<4x320xf32>
    %161 = arith.addf %153, %160 : vector<4x320xf32>
    %162 = vector.extract_strided_slice %0 {offsets = [0, 20], sizes = [4, 1], strides = [1, 1]} : vector<4x25xf32> to vector<4x1xf32>
    %163 = vector.shape_cast %162 : vector<4x1xf32> to vector<4xf32>
    %164 = vector.shape_cast %163 : vector<4xf32> to vector<4x1xf32>
    %c0_42 = arith.constant 0 : index
    %c0_43 = arith.constant 0 : index
    %c80 = arith.constant 80 : index
    %165 = vector.load %arg3[%c0_42, %c0_43, %c80] : memref<1x4x512xf32, #tpu.memory_space<vmem>>, vector<1x4x320xf32>
    %166 = vector.shape_cast %165 : vector<1x4x320xf32> to vector<4x320xf32>
    %167 = vector.broadcast %164 : vector<4x1xf32> to vector<4x320xf32>
    %168 = arith.mulf %167, %166 : vector<4x320xf32>
    %169 = arith.addf %161, %168 : vector<4x320xf32>
    %170 = vector.extract_strided_slice %0 {offsets = [0, 21], sizes = [4, 1], strides = [1, 1]} : vector<4x25xf32> to vector<4x1xf32>
    %171 = vector.shape_cast %170 : vector<4x1xf32> to vector<4xf32>
    %172 = vector.shape_cast %171 : vector<4xf32> to vector<4x1xf32>
    %c0_44 = arith.constant 0 : index
    %c0_45 = arith.constant 0 : index
    %c81 = arith.constant 81 : index
    %173 = vector.load %arg3[%c0_44, %c0_45, %c81] : memref<1x4x512xf32, #tpu.memory_space<vmem>>, vector<1x4x320xf32>
    %174 = vector.shape_cast %173 : vector<1x4x320xf32> to vector<4x320xf32>
    %175 = vector.broadcast %172 : vector<4x1xf32> to vector<4x320xf32>
    %176 = arith.mulf %175, %174 : vector<4x320xf32>
    %177 = arith.addf %169, %176 : vector<4x320xf32>
    %178 = vector.extract_strided_slice %0 {offsets = [0, 22], sizes = [4, 1], strides = [1, 1]} : vector<4x25xf32> to vector<4x1xf32>
    %179 = vector.shape_cast %178 : vector<4x1xf32> to vector<4xf32>
    %180 = vector.shape_cast %179 : vector<4xf32> to vector<4x1xf32>
    %c0_46 = arith.constant 0 : index
    %c0_47 = arith.constant 0 : index
    %c82 = arith.constant 82 : index
    %181 = vector.load %arg3[%c0_46, %c0_47, %c82] : memref<1x4x512xf32, #tpu.memory_space<vmem>>, vector<1x4x320xf32>
    %182 = vector.shape_cast %181 : vector<1x4x320xf32> to vector<4x320xf32>
    %183 = vector.broadcast %180 : vector<4x1xf32> to vector<4x320xf32>
    %184 = arith.mulf %183, %182 : vector<4x320xf32>
    %185 = arith.addf %177, %184 : vector<4x320xf32>
    %186 = vector.extract_strided_slice %0 {offsets = [0, 23], sizes = [4, 1], strides = [1, 1]} : vector<4x25xf32> to vector<4x1xf32>
    %187 = vector.shape_cast %186 : vector<4x1xf32> to vector<4xf32>
    %188 = vector.shape_cast %187 : vector<4xf32> to vector<4x1xf32>
    %c0_48 = arith.constant 0 : index
    %c0_49 = arith.constant 0 : index
    %c83 = arith.constant 83 : index
    %189 = vector.load %arg3[%c0_48, %c0_49, %c83] : memref<1x4x512xf32, #tpu.memory_space<vmem>>, vector<1x4x320xf32>
    %190 = vector.shape_cast %189 : vector<1x4x320xf32> to vector<4x320xf32>
    %191 = vector.broadcast %188 : vector<4x1xf32> to vector<4x320xf32>
    %192 = arith.mulf %191, %190 : vector<4x320xf32>
    %193 = arith.addf %185, %192 : vector<4x320xf32>
    %194 = vector.extract_strided_slice %0 {offsets = [0, 24], sizes = [4, 1], strides = [1, 1]} : vector<4x25xf32> to vector<4x1xf32>
    %195 = vector.shape_cast %194 : vector<4x1xf32> to vector<4xf32>
    %196 = vector.shape_cast %195 : vector<4xf32> to vector<4x1xf32>
    %c0_50 = arith.constant 0 : index
    %c0_51 = arith.constant 0 : index
    %c84 = arith.constant 84 : index
    %197 = vector.load %arg3[%c0_50, %c0_51, %c84] : memref<1x4x512xf32, #tpu.memory_space<vmem>>, vector<1x4x320xf32>
    %198 = vector.shape_cast %197 : vector<1x4x320xf32> to vector<4x320xf32>
    %199 = vector.broadcast %196 : vector<4x1xf32> to vector<4x320xf32>
    %200 = arith.mulf %199, %198 : vector<4x320xf32>
    %201 = arith.addf %193, %200 : vector<4x320xf32>
    %c0_52 = arith.constant 0 : index
    %c0_53 = arith.constant 0 : index
    %202 = vector.load %arg2[%c0_52, %c0_53] : memref<8x4xf32, #tpu.memory_space<vmem>>, vector<8x4xf32>
    %cst_54 = arith.constant dense<0.000000e+00> : vector<8x320xf32>
    %203 = tpu.matmul %202, %201, %cst_54 {dimension_numbers = #tpu.dot_dimension_numbers<[1], [0], [0], [1], [0, 0, 1, 1], [], []>, precision = #tpu.contract_precision<fp32>} : vector<8x4xf32>, vector<4x320xf32>, vector<8x320xf32> -> vector<8x320xf32>
    %c0_55 = arith.constant 0 : index
    %c0_56 = arith.constant 0 : index
    %c0_57 = arith.constant 0 : index
    %204 = vector.load %arg4[%c0_55, %c0_56, %c0_57] : memref<1x8x320xf32, #tpu.memory_space<vmem>>, vector<1x8x320xf32>
    %205 = vector.shape_cast %204 : vector<1x8x320xf32> to vector<8x320xf32>
    %206 = vector.shape_cast %203 : vector<8x320xf32> to vector<1x8x320xf32>
    tpu.vector_store %arg4[%c0_55, %c0_56, %c0_57], %206 {strides = array<i32>} : memref<1x8x320xf32, #tpu.memory_space<vmem>>, vector<1x8x320xf32>,
    return
  }
  func.func @transform_0(%arg0: i32) -> (i32, i32) {
    %c0_i32 = arith.constant 0 : i32
    %c0_i32_0 = arith.constant 0 : i32
    %c0_i32_1 = arith.constant 0 : i32
    return %c0_i32, %c0_i32_0 : i32, i32
  }
  func.func @transform_1(%arg0: i32) -> (i32, i32) {
    %c0_i32 = arith.constant 0 : i32
    %c0_i32_0 = arith.constant 0 : i32
    %c0_i32_1 = arith.constant 0 : i32
    return %c0_i32, %c0_i32_0 : i32, i32
  }
  func.func @transform_2(%arg0: i32) -> (i32, i32, i32) {
    %c0_i32 = arith.constant 0 : i32
    %c0_i32_0 = arith.constant 0 : i32
    %c0_i32_1 = arith.constant 0 : i32
    return %arg0, %c0_i32, %c0_i32_0 : i32, i32, i32
  }
  func.func @transform_3(%arg0: i32) -> (i32, i32, i32) {
    %c0_i32 = arith.constant 0 : i32
    %c0_i32_0 = arith.constant 0 : i32
    %c0_i32_1 = arith.constant 0 : i32
    return %arg0, %c0_i32, %c0_i32_0 : i32, i32, i32
  }
}

</mosaic_0001>

<llo_original>
// kernel: tpu_custom_call.1
$region0: #{tpu_custom_call.1}
  #allocation0 [shape = 'u32[]', space=smem, size = 0x4, offset = 0x4, fixed_abs, tag = 'smem constant byte address 0x4 - core index']
  #allocation1 [shape = 'u32[144,128]{1,0:T(1,128)}', space=vmem, size = 0x12000, scoped, tag = 'internal scratch']
  %s0 = inlined_call_operand.vmem [shape: f32[4,25], index: 0, kind: input, shape index: {}]
  %s1 = inlined_call_operand.vmem [shape: f32[8,4], index: 1, kind: input, shape index: {}]
  %s2 = inlined_call_operand.hbm [shape: f32[2,4,512], index: 2, kind: input, shape index: {}]
  %s3 = inlined_call_operand.hbm [shape: f32[2,8,320], index: 3, kind: output, shape index: {}]
  %s4 = sld [smem:[#allocation0]]
  $region49: #{tpu_custom_call.1} parent=0
    _
  %s6 = ssub.s32 1, %s4
  %s7 = scalar_select 0, %s6, %s4
  $region1: #{tpu_custom_call.1} parent=0
    #allocation2 [shape = 'u8[16384]{0}', space=vmem, size = 0x4000, scoped, tag = 'input window, operand 2']
    #allocation3 [shape = 's32[2]{0}', space=sflag, size = 0x8, scoped, tag = 'scoped memory for tpu_custom_call.1']
    #allocation4 [shape = 's32[2]{0}', space=sflag, size = 0x8, scoped, tag = 'scoped memory for tpu_custom_call.1']
    #allocation5 [shape = 'u8[24576]{0}', space=vmem, size = 0x6000, scoped, tag = 'output window, operand 0']
    %8 = vsyncpa [#allocation3], 0
    %s9 = scalar_lea.sflag [#allocation3], 1
    %10 = vsyncpa %s9, 0
    %11 = vsyncpa [#allocation4], 0
    %s12 = scalar_lea.sflag [#allocation4], 1
    %13 = vsyncpa %s12, 0
    loop: start=0, step=1, limit=4
    $region2: #{tpu_custom_call.1} parent=1 // loop_pre_header
      _
    $region3: #{tpu_custom_call.1} parent=1 // loop_header
      %s15 = sphi 0, %s19
      %p16 = scmp.ge.s32.totalorder %s15, 4
      %s23 = sphi 0, %s23
      %s25 = sphi 0, %s23
      %s26 = sphi 0, %s25
      %s40 = sphi 0, %s26
      %s44 = sphi 0, %s44
      %s46 = sphi 0, %s44
      %s47 = sphi 0, %s46
      %s61 = sphi 0, %s47
      %s67 = sphi 0, %s69
      %s70 = sphi 0, %s67
      %s71 = sphi 0, %s70
      %s87 = sphi 0, %s71
      %s93 = sphi 0, %s95
      %s96 = sphi 0, %s93
      %s97 = sphi 0, %s96
      %s113 = sphi 0, %s97
    $region4: #{tpu_custom_call.1} parent=1 // loop_header_branch
      %18 = sbr.rel (%p16) target = $region8
    $region5: #{tpu_custom_call.1} parent=1 // loop_body
      %s20 = ssub.s32 %s15, 1
      %s21 = ssub.s32 %s15, 2
      %s22 = sadd.s32 %s15, 1
      %s24 = sadd.s32 %s23, 1
      %p27 = scmp.eq.s32.totalorder %s15, 1
      %p28 = scmp.ne.s32.totalorder %s23, %s25
      %p29 = scmp.eq.s32.totalorder %s15, 0
      %p30 = por %p28, %p29
      %p31 = scmp.ne.s32.totalorder %s23, %s25
      %p32 = scmp.eq.s32.totalorder %s20, 1
      %p33 = por %p31, %p32
      %p34 = scmp.ne.s32.totalorder %s25, %s26
      %p35 = scmp.eq.s32.totalorder %s20, 0
      %p36 = por %p34, %p35
      %p37 = scmp.ne.s32.totalorder %s25, %s26
      %p38 = scmp.eq.s32.totalorder %s21, 1
      %p39 = por %p37, %p38
      %p41 = scmp.ne.s32.totalorder %s26, %s40
      %p42 = scmp.eq.s32.totalorder %s21, 0
      %p43 = por %p41, %p42
      %s45 = sadd.s32 %s44, 1
      %p48 = scmp.eq.s32.totalorder %s15, 1
      %p49 = scmp.ne.s32.totalorder %s44, %s46
      %p50 = scmp.eq.s32.totalorder %s15, 0
      %p51 = por %p49, %p50
      %p52 = scmp.ne.s32.totalorder %s44, %s46
      %p53 = scmp.eq.s32.totalorder %s20, 1
      %p54 = por %p52, %p53
      %p55 = scmp.ne.s32.totalorder %s46, %s47
      %p56 = scmp.eq.s32.totalorder %s20, 0
      %p57 = por %p55, %p56
      %p58 = scmp.ne.s32.totalorder %s46, %s47
      %p59 = scmp.eq.s32.totalorder %s21, 1
      %p60 = por %p58, %p59
      %p62 = scmp.ne.s32.totalorder %s47, %s61
      %p63 = scmp.eq.s32.totalorder %s21, 0
      %p64 = por %p62, %p63
      %s65 = ssub.s32 %s15, %s22
      %p66 = scmp.eq.s32.totalorder %s65, 0
      %s68 = sadd.s32 %s67, 1
      %s69 = scalar_select %p66, %s67, %s68
      %p72 = pneg %p66
      %p73 = scmp.eq.s32.totalorder %s15, 1
      %p74 = por %p72, %p73
      %p75 = scmp.ne.s32.totalorder %s67, %s70
      %p76 = scmp.eq.s32.totalorder %s15, 0
      %p77 = por %p75, %p76
      %p78 = scmp.ne.s32.totalorder %s67, %s70
      %p79 = scmp.eq.s32.totalorder %s20, 1
      %p80 = por %p78, %p79
      %p81 = scmp.ne.s32.totalorder %s70, %s71
      %p82 = scmp.eq.s32.totalorder %s20, 0
      %p83 = por %p81, %p82
      %p84 = scmp.ne.s32.totalorder %s70, %s71
      %p85 = scmp.eq.s32.totalorder %s21, 1
      %p86 = por %p84, %p85
      %p88 = scmp.ne.s32.totalorder %s71, %s87
      %p89 = scmp.eq.s32.totalorder %s21, 0
      %p90 = por %p88, %p89
      %s91 = ssub.s32 %s15, %s22
      %p92 = scmp.eq.s32.totalorder %s91, 0
      %s94 = sadd.s32 %s93, 1
      %s95 = scalar_select %p92, %s93, %s94
      %p98 = pneg %p92
      %p99 = scmp.eq.s32.totalorder %s15, 1
      %p100 = por %p98, %p99
      %p101 = scmp.ne.s32.totalorder %s93, %s96
      %p102 = scmp.eq.s32.totalorder %s15, 0
      %p103 = por %p101, %p102
      %p104 = scmp.ne.s32.totalorder %s93, %s96
      %p105 = scmp.eq.s32.totalorder %s20, 1
      %p106 = por %p104, %p105
      %p107 = scmp.ne.s32.totalorder %s96, %s97
      %p108 = scmp.eq.s32.totalorder %s20, 0
      %p109 = por %p107, %p108
      %p110 = scmp.ne.s32.totalorder %s96, %s97
      %p111 = scmp.eq.s32.totalorder %s21, 1
      %p112 = por %p110, %p111
      %p114 = scmp.ne.s32.totalorder %s97, %s113
      %p115 = scmp.eq.s32.totalorder %s21, 0
      %p116 = por %p114, %p115
      %p117 = scmp.le.s32.totalorder 1, %s15
      %p118 = scmp.lt.s32.totalorder %s15, 3
      %p119 = pnand %p117, %p118
      %p120 = pneg %p119
      // Predicated region
      $region9: #{tpu_custom_call.1} parent=5 // pred_check
        _
      $region10: #{tpu_custom_call.1} parent=5 // pred_check_branch
        %122 = sbr.rel (%p119) target = $region12
      $region11: #{tpu_custom_call.1} parent=5 // pred_region
        %s123 = ssub.s32 %s15, 1
        // Predicated region
        $region13: #{tpu_custom_call.1} parent=11 // pred_check
          %p124 = pneg %p36
        $region14: #{tpu_custom_call.1} parent=11 // pred_check_branch
          %126 = sbr.rel (%p124) target = $region16
        $region15: #{tpu_custom_call.1} parent=11 // pred_region
          _
        $region16: #{tpu_custom_call.1} parent=11 // pred_fallthru
          _
        // Predicated region
        $region17: #{tpu_custom_call.1} parent=11 // pred_check
          %p127 = pneg %p57
        $region18: #{tpu_custom_call.1} parent=11 // pred_check_branch
          %129 = sbr.rel (%p127) target = $region20
        $region19: #{tpu_custom_call.1} parent=11 // pred_region
          _
        $region20: #{tpu_custom_call.1} parent=11 // pred_fallthru
          _
      $region12: #{tpu_custom_call.1} parent=5 // pred_fallthru
        _
      %p130 = scmp.lt.s32.totalorder %s15, 2
      // Predicated region
      $region21: #{tpu_custom_call.1} parent=5 // pred_check
        %p131 = pneg %p130
      $region22: #{tpu_custom_call.1} parent=5 // pred_check_branch
        %133 = sbr.rel (%p131) target = $region24
      $region23: #{tpu_custom_call.1} parent=5 // pred_region
        // Predicated region
        $region25: #{tpu_custom_call.1} parent=23 // pred_check
          %p134 = pneg %p77
        $region26: #{tpu_custom_call.1} parent=23 // pred_check_branch
          %136 = sbr.rel (%p134) target = $region28
        $region27: #{tpu_custom_call.1} parent=23 // pred_region
          %s137 = sand.u32 %s67, 1
          %s138 = scalar_lea.sflag [#allocation3], %s137
          %s139 = sand.u32 %s67, 1
          %s140 = smul.addr %s139, 16
          %s141 = scalar_lea.vmem [#allocation2], %s140
          %s143 = ssub.s32 256, 256
          %144 = vsyncadd %s138, %s143
          %s145 = smul.addr %s15, 4
          %s146 = smul.addr %s145, 64
          %s147 = scalar_lea.hbm %s2, %s146
          %s149 = sshll.u32 %s141, 4
          %s150 = int_to_ptr.vmem [resolvable:$true] %s149
          %152 = dma.hbm_to_vmem [thread:$0]  %s147, 256, %s150, %s138
        $region28: #{tpu_custom_call.1} parent=23 // pred_fallthru
          _
      $region24: #{tpu_custom_call.1} parent=5 // pred_fallthru
        _
      %p153 = scmp.le.s32.totalorder 1, %s15
      %p154 = scmp.lt.s32.totalorder %s15, 3
      %p155 = pnand %p153, %p154
      %p156 = pneg %p155
      // Predicated region
      $region29: #{tpu_custom_call.1} parent=5 // pred_check
        _
      $region30: #{tpu_custom_call.1} parent=5 // pred_check_branch
        %158 = sbr.rel (%p155) target = $region32
      $region31: #{tpu_custom_call.1} parent=5 // pred_region
        %s159 = ssub.s32 %s15, 1
        %s160 = sand.u32 %s70, 1
        %s161 = scalar_lea.sflag [#allocation3], %s160
        %s162 = sand.u32 %s70, 1
        %s163 = smul.addr %s162, 16
        %s164 = scalar_lea.vmem [#allocation2], %s163
        // Predicated region
        $region33: #{tpu_custom_call.1} parent=31 // pred_check
          %p165 = pneg %p83
        $region34: #{tpu_custom_call.1} parent=31 // pred_check_branch
          %167 = sbr.rel (%p165) target = $region36
        $region35: #{tpu_custom_call.1} parent=31 // pred_region
          %168 = dma.done %s161, 256
        $region36: #{tpu_custom_call.1} parent=31 // pred_fallthru
          _
        %p169 = pneg %p36
        %p170 = pneg %p33
        %p171 = pneg %p57
        %p172 = pneg %p54
        %s173 = sand.u32 %s70, 1
        %s174 = scalar_lea.sflag [#allocation3], %s173
        %s175 = sand.u32 %s70, 1
        %s176 = smul.addr %s175, 16
        %s177 = scalar_lea.vmem [#allocation2], %s176
        %p178 = pneg %p83
        %p179 = pneg %p80
        %p180 = pneg %p109
        %p181 = pneg %p106
        %s182 = sand.u32 %s96, 1
        %s183 = scalar_lea.sflag [#allocation4], %s182
        %s184 = sand.u32 %s96, 1
        %s185 = smul.addr %s184, 24
        %s186 = scalar_lea.vmem [#allocation5], %s185
        %v187 = vld [vmem:[%s0] sm:$0xf]
        %v188 = vld [vmem:[%s164] sm:$0xff]
        %v189 = vld [vmem:[%s164 + $0x8] sm:$0xf]
        %191 = vset.pattern.permute.xlu0 0
        %192 = vperm.xlu0 %191, %v187
        %v193 = vpop.permute.xlu0 %192
        %v196 = vcombine.high %v188, %v188
        %v198 = vmul.f32 %v193, %v188
        %v199 = vmul.f32 %v193, %v196
        %v200 = vmul.f32 %v193, %v189
        %v201 = vadd.f32 %v198, 0.0
        %v202 = vadd.f32 %v199, 0.0
        %v203 = vadd.f32 %v200, 0.0
        %v204 = vld [vmem:[%s164] sm:$0xff]
        %v205 = vld [vmem:[%s164 + $0x8] sm:$0xf]
        %206 = vset.pattern.permute.xlu0 1
        %207 = vperm.xlu0 %206, %v187
        %v208 = vpop.permute.xlu0 %207
        %v212 = vcombine.high %v204, %v204
        %213 = vrot.lane.b32.xlu0 %v204, 127
        %v214 = vpop.permute.xlu0 %213
        %215 = vrot.lane.b32.xlu0 %v212, 127
        %v216 = vpop.permute.xlu0 %215
        %217 = vrot.lane.b32.xlu0 %v205, 127
        %v218 = vpop.permute.xlu0 %217
        %vm219 = vcmask 1039360
        %v220 = vsel %vm219, %v214, %v216
        %v221 = vsel %vm219, %v216, %v218
        %v225 = vmul.f32 %v208, %v220
        %v226 = vmul.f32 %v208, %v221
        %v227 = vmul.f32 %v208, %v218
        %v228 = vadd.f32 %v201, %v225
        %v229 = vadd.f32 %v202, %v226
        %v230 = vadd.f32 %v203, %v227
        %v231 = vld [vmem:[%s164] sm:$0xff]
        %v232 = vld [vmem:[%s164 + $0x8] sm:$0xf]
        %233 = vset.pattern.permute.xlu0 2
        %234 = vperm.xlu0 %233, %v187
        %v235 = vpop.permute.xlu0 %234
        %v239 = vcombine.high %v231, %v231
        %240 = vrot.lane.b32.xlu0 %v231, 126
        %v241 = vpop.permute.xlu0 %240
        %242 = vrot.lane.b32.xlu0 %v239, 126
        %v243 = vpop.permute.xlu0 %242
        %244 = vrot.lane.b32.xlu0 %v232, 126
        %v245 = vpop.permute.xlu0 %244
        %vm246 = vcmask 1031168
        %v247 = vsel %vm246, %v241, %v243
        %v248 = vsel %vm246, %v243, %v245
        %v252 = vmul.f32 %v235, %v247
        %v253 = vmul.f32 %v235, %v248
        %v254 = vmul.f32 %v235, %v245
        %v255 = vadd.f32 %v228, %v252
        %v256 = vadd.f32 %v229, %v253
        %v257 = vadd.f32 %v230, %v254
        %v258 = vld [vmem:[%s164] sm:$0xff]
        %v259 = vld [vmem:[%s164 + $0x8] sm:$0xf]
        %260 = vset.pattern.permute.xlu0 3
        %261 = vperm.xlu0 %260, %v187
        %v262 = vpop.permute.xlu0 %261
        %v266 = vcombine.high %v258, %v258
        %267 = vrot.lane.b32.xlu0 %v258, 125
        %v268 = vpop.permute.xlu0 %267
        %269 = vrot.lane.b32.xlu0 %v266, 125
        %v270 = vpop.permute.xlu0 %269
        %271 = vrot.lane.b32.xlu0 %v259, 125
        %v272 = vpop.permute.xlu0 %271
        %vm273 = vcmask 1022976
        %v274 = vsel %vm273, %v268, %v270
        %v275 = vsel %vm273, %v270, %v272
        %v279 = vmul.f32 %v262, %v274
        %v280 = vmul.f32 %v262, %v275
        %v281 = vmul.f32 %v262, %v272
        %v282 = vadd.f32 %v255, %v279
        %v283 = vadd.f32 %v256, %v280
        %v284 = vadd.f32 %v257, %v281
        %v285 = vld [vmem:[%s164] sm:$0xff]
        %v286 = vld [vmem:[%s164 + $0x8] sm:$0xf]
        %287 = vset.pattern.permute.xlu0 4
        %288 = vperm.xlu0 %287, %v187
        %v289 = vpop.permute.xlu0 %288
        %v293 = vcombine.high %v285, %v285
        %294 = vrot.lane.b32.xlu0 %v285, 124
        %v295 = vpop.permute.xlu0 %294
        %296 = vrot.lane.b32.xlu0 %v293, 124
        %v297 = vpop.permute.xlu0 %296
        %298 = vrot.lane.b32.xlu0 %v286, 124
        %v299 = vpop.permute.xlu0 %298
        %vm300 = vcmask 1014784
        %v301 = vsel %vm300, %v295, %v297
        %v302 = vsel %vm300, %v297, %v299
        %v306 = vmul.f32 %v289, %v301
        %v307 = vmul.f32 %v289, %v302
        %v308 = vmul.f32 %v289, %v299
        %v309 = vadd.f32 %v282, %v306
        %v310 = vadd.f32 %v283, %v307
        %v311 = vadd.f32 %v284, %v308
        %v312 = vld [vmem:[%s164] sm:$0xff]
        %v313 = vld [vmem:[%s164 + $0x8] sm:$0xf]
        %314 = vset.pattern.permute.xlu0 5
        %315 = vperm.xlu0 %314, %v187
        %v316 = vpop.permute.xlu0 %315
        %v320 = vcombine.high %v312, %v312
        %321 = vrot.lane.b32.xlu0 %v312, 108
        %v322 = vpop.permute.xlu0 %321
        %323 = vrot.lane.b32.xlu0 %v320, 108
        %v324 = vpop.permute.xlu0 %323
        %325 = vrot.lane.b32.xlu0 %v313, 108
        %v326 = vpop.permute.xlu0 %325
        %vm327 = vcmask 883712
        %v328 = vsel %vm327, %v322, %v324
        %v329 = vsel %vm327, %v324, %v326
        %v333 = vmul.f32 %v316, %v328
        %v334 = vmul.f32 %v316, %v329
        %v335 = vmul.f32 %v316, %v326
        %v336 = vadd.f32 %v309, %v333
        %v337 = vadd.f32 %v310, %v334
        %v338 = vadd.f32 %v311, %v335
        %v339 = vld [vmem:[%s164] sm:$0xff]
        %v340 = vld [vmem:[%s164 + $0x8] sm:$0xf]
        %341 = vset.pattern.permute.xlu0 6
        %342 = vperm.xlu0 %341, %v187
        %v343 = vpop.permute.xlu0 %342
        %v347 = vcombine.high %v339, %v339
        %348 = vrot.lane.b32.xlu0 %v339, 107
        %v349 = vpop.permute.xlu0 %348
        %350 = vrot.lane.b32.xlu0 %v347, 107
        %v351 = vpop.permute.xlu0 %350
        %352 = vrot.lane.b32.xlu0 %v340, 107
        %v353 = vpop.permute.xlu0 %352
        %vm354 = vcmask 875520
        %v355 = vsel %vm354, %v349, %v351
        %v356 = vsel %vm354, %v351, %v353
        %v360 = vmul.f32 %v343, %v355
        %v361 = vmul.f32 %v343, %v356
        %v362 = vmul.f32 %v343, %v353
        %v363 = vadd.f32 %v336, %v360
        %v364 = vadd.f32 %v337, %v361
        %v365 = vadd.f32 %v338, %v362
        %v366 = vld [vmem:[%s164] sm:$0xff]
        %v367 = vld [vmem:[%s164 + $0x8] sm:$0xf]
        %368 = vset.pattern.permute.xlu0 7
        %369 = vperm.xlu0 %368, %v187
        %v370 = vpop.permute.xlu0 %369
        %v374 = vcombine.high %v366, %v366
        %375 = vrot.lane.b32.xlu0 %v366, 106
        %v376 = vpop.permute.xlu0 %375
        %377 = vrot.lane.b32.xlu0 %v374, 106
        %v378 = vpop.permute.xlu0 %377
        %379 = vrot.lane.b32.xlu0 %v367, 106
        %v380 = vpop.permute.xlu0 %379
        %vm381 = vcmask 867328
        %v382 = vsel %vm381, %v376, %v378
        %v383 = vsel %vm381, %v378, %v380
        %v387 = vmul.f32 %v370, %v382
        %v388 = vmul.f32 %v370, %v383
        %v389 = vmul.f32 %v370, %v380
        %v390 = vadd.f32 %v363, %v387
        %v391 = vadd.f32 %v364, %v388
        %v392 = vadd.f32 %v365, %v389
        %v393 = vld [vmem:[%s164] sm:$0xff]
        %v394 = vld [vmem:[%s164 + $0x8] sm:$0xf]
        %395 = vset.pattern.permute.xlu0 8
        %396 = vperm.xlu0 %395, %v187
        %v397 = vpop.permute.xlu0 %396
        %v401 = vcombine.high %v393, %v393
        %402 = vrot.lane.b32.xlu0 %v393, 105
        %v403 = vpop.permute.xlu0 %402
        %404 = vrot.lane.b32.xlu0 %v401, 105
        %v405 = vpop.permute.xlu0 %404
        %406 = vrot.lane.b32.xlu0 %v394, 105
        %v407 = vpop.permute.xlu0 %406
        %vm408 = vcmask 859136
        %v409 = vsel %vm408, %v403, %v405
        %v410 = vsel %vm408, %v405, %v407
        %v414 = vmul.f32 %v397, %v409
        %v415 = vmul.f32 %v397, %v410
        %v416 = vmul.f32 %v397, %v407
        %v417 = vadd.f32 %v390, %v414
        %v418 = vadd.f32 %v391, %v415
        %v419 = vadd.f32 %v392, %v416
        %v420 = vld [vmem:[%s164] sm:$0xff]
        %v421 = vld [vmem:[%s164 + $0x8] sm:$0xf]
        %422 = vset.pattern.permute.xlu0 9
        %423 = vperm.xlu0 %422, %v187
        %v424 = vpop.permute.xlu0 %423
        %v428 = vcombine.high %v420, %v420
        %429 = vrot.lane.b32.xlu0 %v420, 104
        %v430 = vpop.permute.xlu0 %429
        %431 = vrot.lane.b32.xlu0 %v428, 104
        %v432 = vpop.permute.xlu0 %431
        %433 = vrot.lane.b32.xlu0 %v421, 104
        %v434 = vpop.permute.xlu0 %433
        %vm435 = vcmask 850944
        %v436 = vsel %vm435, %v430, %v432
        %v437 = vsel %vm435, %v432, %v434
        %v441 = vmul.f32 %v424, %v436
        %v442 = vmul.f32 %v424, %v437
        %v443 = vmul.f32 %v424, %v434
        %v444 = vadd.f32 %v417, %v441
        %v445 = vadd.f32 %v418, %v442
        %v446 = vadd.f32 %v419, %v443
        %v447 = vld [vmem:[%s164] sm:$0xff]
        %v448 = vld [vmem:[%s164 + $0x8] sm:$0xf]
        %449 = vset.pattern.permute.xlu0 10
        %450 = vperm.xlu0 %449, %v187
        %v451 = vpop.permute.xlu0 %450
        %v455 = vcombine.high %v447, %v447
        %456 = vrot.lane.b32.xlu0 %v447, 88
        %v457 = vpop.permute.xlu0 %456
        %458 = vrot.lane.b32.xlu0 %v455, 88
        %v459 = vpop.permute.xlu0 %458
        %460 = vrot.lane.b32.xlu0 %v448, 88
        %v461 = vpop.permute.xlu0 %460
        %vm462 = vcmask 719872
        %v463 = vsel %vm462, %v457, %v459
        %v464 = vsel %vm462, %v459, %v461
        %v468 = vmul.f32 %v451, %v463
        %v469 = vmul.f32 %v451, %v464
        %v470 = vmul.f32 %v451, %v461
        %v471 = vadd.f32 %v444, %v468
        %v472 = vadd.f32 %v445, %v469
        %v473 = vadd.f32 %v446, %v470
        %v474 = vld [vmem:[%s164] sm:$0xff]
        %v475 = vld [vmem:[%s164 + $0x8] sm:$0xf]
        %476 = vset.pattern.permute.xlu0 11
        %477 = vperm.xlu0 %476, %v187
        %v478 = vpop.permute.xlu0 %477
        %v482 = vcombine.high %v474, %v474
        %483 = vrot.lane.b32.xlu0 %v474, 87
        %v484 = vpop.permute.xlu0 %483
        %485 = vrot.lane.b32.xlu0 %v482, 87
        %v486 = vpop.permute.xlu0 %485
        %487 = vrot.lane.b32.xlu0 %v475, 87
        %v488 = vpop.permute.xlu0 %487
        %vm489 = vcmask 711680
        %v490 = vsel %vm489, %v484, %v486
        %v491 = vsel %vm489, %v486, %v488
        %v495 = vmul.f32 %v478, %v490
        %v496 = vmul.f32 %v478, %v491
        %v497 = vmul.f32 %v478, %v488
        %v498 = vadd.f32 %v471, %v495
        %v499 = vadd.f32 %v472, %v496
        %v500 = vadd.f32 %v473, %v497
        %v501 = vld [vmem:[%s164] sm:$0xff]
        %v502 = vld [vmem:[%s164 + $0x8] sm:$0xf]
        %503 = vset.pattern.permute.xlu0 12
        %504 = vperm.xlu0 %503, %v187
        %v505 = vpop.permute.xlu0 %504
        %v509 = vcombine.high %v501, %v501
        %510 = vrot.lane.b32.xlu0 %v501, 86
        %v511 = vpop.permute.xlu0 %510
        %512 = vrot.lane.b32.xlu0 %v509, 86
        %v513 = vpop.permute.xlu0 %512
        %514 = vrot.lane.b32.xlu0 %v502, 86
        %v515 = vpop.permute.xlu0 %514
        %vm516 = vcmask 703488
        %v517 = vsel %vm516, %v511, %v513
        %v518 = vsel %vm516, %v513, %v515
        %v522 = vmul.f32 %v505, %v517
        %v523 = vmul.f32 %v505, %v518
        %v524 = vmul.f32 %v505, %v515
        %v525 = vadd.f32 %v498, %v522
        %v526 = vadd.f32 %v499, %v523
        %v527 = vadd.f32 %v500, %v524
        %v528 = vld [vmem:[%s164] sm:$0xff]
        %v529 = vld [vmem:[%s164 + $0x8] sm:$0xf]
        %530 = vset.pattern.permute.xlu0 13
        %531 = vperm.xlu0 %530, %v187
        %v532 = vpop.permute.xlu0 %531
        %v536 = vcombine.high %v528, %v528
        %537 = vrot.lane.b32.xlu0 %v528, 85
        %v538 = vpop.permute.xlu0 %537
        %539 = vrot.lane.b32.xlu0 %v536, 85
        %v540 = vpop.permute.xlu0 %539
        %541 = vrot.lane.b32.xlu0 %v529, 85
        %v542 = vpop.permute.xlu0 %541
        %vm543 = vcmask 695296
        %v544 = vsel %vm543, %v538, %v540
        %v545 = vsel %vm543, %v540, %v542
        %v549 = vmul.f32 %v532, %v544
        %v550 = vmul.f32 %v532, %v545
        %v551 = vmul.f32 %v532, %v542
        %v552 = vadd.f32 %v525, %v549
        %v553 = vadd.f32 %v526, %v550
        %v554 = vadd.f32 %v527, %v551
        %v555 = vld [vmem:[%s164] sm:$0xff]
        %v556 = vld [vmem:[%s164 + $0x8] sm:$0xf]
        %557 = vset.pattern.permute.xlu0 14
        %558 = vperm.xlu0 %557, %v187
        %v559 = vpop.permute.xlu0 %558
        %v563 = vcombine.high %v555, %v555
        %564 = vrot.lane.b32.xlu0 %v555, 84
        %v565 = vpop.permute.xlu0 %564
        %566 = vrot.lane.b32.xlu0 %v563, 84
        %v567 = vpop.permute.xlu0 %566
        %568 = vrot.lane.b32.xlu0 %v556, 84
        %v569 = vpop.permute.xlu0 %568
        %vm570 = vcmask 687104
        %v571 = vsel %vm570, %v565, %v567
        %v572 = vsel %vm570, %v567, %v569
        %v576 = vmul.f32 %v559, %v571
        %v577 = vmul.f32 %v559, %v572
        %v578 = vmul.f32 %v559, %v569
        %v579 = vadd.f32 %v552, %v576
        %v580 = vadd.f32 %v553, %v577
        %v581 = vadd.f32 %v554, %v578
        %v582 = vld [vmem:[%s164] sm:$0xff]
        %v583 = vld [vmem:[%s164 + $0x8] sm:$0xf]
        %584 = vset.pattern.permute.xlu0 15
        %585 = vperm.xlu0 %584, %v187
        %v586 = vpop.permute.xlu0 %585
        %v590 = vcombine.high %v582, %v582
        %591 = vrot.lane.b32.xlu0 %v582, 68
        %v592 = vpop.permute.xlu0 %591
        %593 = vrot.lane.b32.xlu0 %v590, 68
        %v594 = vpop.permute.xlu0 %593
        %595 = vrot.lane.b32.xlu0 %v583, 68
        %v596 = vpop.permute.xlu0 %595
        %vm597 = vcmask 556032
        %v598 = vsel %vm597, %v592, %v594
        %v599 = vsel %vm597, %v594, %v596
        %v603 = vmul.f32 %v586, %v598
        %v604 = vmul.f32 %v586, %v599
        %v605 = vmul.f32 %v586, %v596
        %v606 = vadd.f32 %v579, %v603
        %v607 = vadd.f32 %v580, %v604
        %v608 = vadd.f32 %v581, %v605
        %v609 = vld [vmem:[%s164] sm:$0xff]
        %v610 = vld [vmem:[%s164 + $0x8] sm:$0xf]
        %611 = vset.pattern.permute.xlu0 16
        %612 = vperm.xlu0 %611, %v187
        %v613 = vpop.permute.xlu0 %612
        %v617 = vcombine.high %v609, %v609
        %618 = vrot.lane.b32.xlu0 %v609, 67
        %v619 = vpop.permute.xlu0 %618
        %620 = vrot.lane.b32.xlu0 %v617, 67
        %v621 = vpop.permute.xlu0 %620
        %622 = vrot.lane.b32.xlu0 %v610, 67
        %v623 = vpop.permute.xlu0 %622
        %vm624 = vcmask 547840
        %v625 = vsel %vm624, %v619, %v621
        %v626 = vsel %vm624, %v621, %v623
        %v630 = vmul.f32 %v613, %v625
        %v631 = vmul.f32 %v613, %v626
        %v632 = vmul.f32 %v613, %v623
        %v633 = vadd.f32 %v606, %v630
        %v634 = vadd.f32 %v607, %v631
        %v635 = vadd.f32 %v608, %v632
        %v636 = vld [vmem:[%s164] sm:$0xff]
        %v637 = vld [vmem:[%s164 + $0x8] sm:$0xf]
        %638 = vset.pattern.permute.xlu0 17
        %639 = vperm.xlu0 %638, %v187
        %v640 = vpop.permute.xlu0 %639
        %v644 = vcombine.high %v636, %v636
        %645 = vrot.lane.b32.xlu0 %v636, 66
        %v646 = vpop.permute.xlu0 %645
        %647 = vrot.lane.b32.xlu0 %v644, 66
        %v648 = vpop.permute.xlu0 %647
        %649 = vrot.lane.b32.xlu0 %v637, 66
        %v650 = vpop.permute.xlu0 %649
        %vm651 = vcmask 539648
        %v652 = vsel %vm651, %v646, %v648
        %v653 = vsel %vm651, %v648, %v650
        %v657 = vmul.f32 %v640, %v652
        %v658 = vmul.f32 %v640, %v653
        %v659 = vmul.f32 %v640, %v650
        %v660 = vadd.f32 %v633, %v657
        %v661 = vadd.f32 %v634, %v658
        %v662 = vadd.f32 %v635, %v659
        %v663 = vld [vmem:[%s164] sm:$0xff]
        %v664 = vld [vmem:[%s164 + $0x8] sm:$0xf]
        %665 = vset.pattern.permute.xlu0 18
        %666 = vperm.xlu0 %665, %v187
        %v667 = vpop.permute.xlu0 %666
        %v671 = vcombine.high %v663, %v663
        %672 = vrot.lane.b32.xlu0 %v663, 65
        %v673 = vpop.permute.xlu0 %672
        %674 = vrot.lane.b32.xlu0 %v671, 65
        %v675 = vpop.permute.xlu0 %674
        %676 = vrot.lane.b32.xlu0 %v664, 65
        %v677 = vpop.permute.xlu0 %676
        %vm678 = vcmask 531456
        %v679 = vsel %vm678, %v673, %v675
        %v680 = vsel %vm678, %v675, %v677
        %v684 = vmul.f32 %v667, %v679
        %v685 = vmul.f32 %v667, %v680
        %v686 = vmul.f32 %v667, %v677
        %v687 = vadd.f32 %v660, %v684
        %v688 = vadd.f32 %v661, %v685
        %v689 = vadd.f32 %v662, %v686
        %v690 = vld [vmem:[%s164] sm:$0xff]
        %v691 = vld [vmem:[%s164 + $0x8] sm:$0xf]
        %692 = vset.pattern.permute.xlu0 19
        %693 = vperm.xlu0 %692, %v187
        %v694 = vpop.permute.xlu0 %693
        %v698 = vcombine.high %v690, %v690
        %699 = vrot.lane.b32.xlu0 %v690, 64
        %v700 = vpop.permute.xlu0 %699
        %701 = vrot.lane.b32.xlu0 %v698, 64
        %v702 = vpop.permute.xlu0 %701
        %703 = vrot.lane.b32.xlu0 %v691, 64
        %v704 = vpop.permute.xlu0 %703
        %vm705 = vcmask 523264
        %v706 = vsel %vm705, %v700, %v702
        %v707 = vsel %vm705, %v702, %v704
        %v711 = vmul.f32 %v694, %v706
        %v712 = vmul.f32 %v694, %v707
        %v713 = vmul.f32 %v694, %v704
        %v714 = vadd.f32 %v687, %v711
        %v715 = vadd.f32 %v688, %v712
        %v716 = vadd.f32 %v689, %v713
        %v717 = vld [vmem:[%s164] sm:$0xff]
        %v718 = vld [vmem:[%s164 + $0x8] sm:$0xff]
        %719 = vset.pattern.permute.xlu0 20
        %720 = vperm.xlu0 %719, %v187
        %v721 = vpop.permute.xlu0 %720
        %v725 = vcombine.high %v717, %v717
        %v726 = vcombine.high %v718, %v718
        %727 = vrot.lane.b32.xlu0 %v717, 48
        %v728 = vpop.permute.xlu0 %727
        %729 = vrot.lane.b32.xlu0 %v725, 48
        %v730 = vpop.permute.xlu0 %729
        %731 = vrot.lane.b32.xlu0 %v718, 48
        %v732 = vpop.permute.xlu0 %731
        %733 = vrot.lane.b32.xlu0 %v726, 48
        %v734 = vpop.permute.xlu0 %733
        %vm735 = vcmask 392192
        %v736 = vsel %vm735, %v728, %v730
        %v737 = vsel %vm735, %v730, %v732
        %v738 = vsel %vm735, %v732, %v734
        %v742 = vmul.f32 %v721, %v736
        %v743 = vmul.f32 %v721, %v737
        %v744 = vmul.f32 %v721, %v738
        %v745 = vadd.f32 %v714, %v742
        %v746 = vadd.f32 %v715, %v743
        %v747 = vadd.f32 %v716, %v744
        %v748 = vld [vmem:[%s164] sm:$0xff]
        %v749 = vld [vmem:[%s164 + $0x8] sm:$0xff]
        %750 = vset.pattern.permute.xlu0 21
        %751 = vperm.xlu0 %750, %v187
        %v752 = vpop.permute.xlu0 %751
        %v756 = vcombine.high %v748, %v748
        %v757 = vcombine.high %v749, %v749
        %758 = vrot.lane.b32.xlu0 %v748, 47
        %v759 = vpop.permute.xlu0 %758
        %760 = vrot.lane.b32.xlu0 %v756, 47
        %v761 = vpop.permute.xlu0 %760
        %762 = vrot.lane.b32.xlu0 %v749, 47
        %v763 = vpop.permute.xlu0 %762
        %764 = vrot.lane.b32.xlu0 %v757, 47
        %v765 = vpop.permute.xlu0 %764
        %vm766 = vcmask 384000
        %v767 = vsel %vm766, %v759, %v761
        %v768 = vsel %vm766, %v761, %v763
        %v769 = vsel %vm766, %v763, %v765
        %v773 = vmul.f32 %v752, %v767
        %v774 = vmul.f32 %v752, %v768
        %v775 = vmul.f32 %v752, %v769
        %v776 = vadd.f32 %v745, %v773
        %v777 = vadd.f32 %v746, %v774
        %v778 = vadd.f32 %v747, %v775
        %v779 = vld [vmem:[%s164] sm:$0xff]
        %v780 = vld [vmem:[%s164 + $0x8] sm:$0xff]
        %781 = vset.pattern.permute.xlu0 22
        %782 = vperm.xlu0 %781, %v187
        %v783 = vpop.permute.xlu0 %782
        %v787 = vcombine.high %v779, %v779
        %v788 = vcombine.high %v780, %v780
        %789 = vrot.lane.b32.xlu0 %v779, 46
        %v790 = vpop.permute.xlu0 %789
        %791 = vrot.lane.b32.xlu0 %v787, 46
        %v792 = vpop.permute.xlu0 %791
        %793 = vrot.lane.b32.xlu0 %v780, 46
        %v794 = vpop.permute.xlu0 %793
        %795 = vrot.lane.b32.xlu0 %v788, 46
        %v796 = vpop.permute.xlu0 %795
        %vm797 = vcmask 375808
        %v798 = vsel %vm797, %v790, %v792
        %v799 = vsel %vm797, %v792, %v794
        %v800 = vsel %vm797, %v794, %v796
        %v804 = vmul.f32 %v783, %v798
        %v805 = vmul.f32 %v783, %v799
        %v806 = vmul.f32 %v783, %v800
        %v807 = vadd.f32 %v776, %v804
        %v808 = vadd.f32 %v777, %v805
        %v809 = vadd.f32 %v778, %v806
        %v810 = vld [vmem:[%s164] sm:$0xff]
        %v811 = vld [vmem:[%s164 + $0x8] sm:$0xff]
        %812 = vset.pattern.permute.xlu0 23
        %813 = vperm.xlu0 %812, %v187
        %v814 = vpop.permute.xlu0 %813
        %v818 = vcombine.high %v810, %v810
        %v819 = vcombine.high %v811, %v811
        %820 = vrot.lane.b32.xlu0 %v810, 45
        %v821 = vpop.permute.xlu0 %820
        %822 = vrot.lane.b32.xlu0 %v818, 45
        %v823 = vpop.permute.xlu0 %822
        %824 = vrot.lane.b32.xlu0 %v811, 45
        %v825 = vpop.permute.xlu0 %824
        %826 = vrot.lane.b32.xlu0 %v819, 45
        %v827 = vpop.permute.xlu0 %826
        %vm828 = vcmask 367616
        %v829 = vsel %vm828, %v821, %v823
        %v830 = vsel %vm828, %v823, %v825
        %v831 = vsel %vm828, %v825, %v827
        %v835 = vmul.f32 %v814, %v829
        %v836 = vmul.f32 %v814, %v830
        %v837 = vmul.f32 %v814, %v831
        %v838 = vadd.f32 %v807, %v835
        %v839 = vadd.f32 %v808, %v836
        %v840 = vadd.f32 %v809, %v837
        %v841 = vld [vmem:[%s164] sm:$0xff]
        %v842 = vld [vmem:[%s164 + $0x8] sm:$0xff]
        %843 = vset.pattern.permute.xlu0 24
        %844 = vperm.xlu0 %843, %v187
        %v845 = vpop.permute.xlu0 %844
        %v849 = vcombine.high %v841, %v841
        %v850 = vcombine.high %v842, %v842
        %851 = vrot.lane.b32.xlu0 %v841, 44
        %v852 = vpop.permute.xlu0 %851
        %853 = vrot.lane.b32.xlu0 %v849, 44
        %v854 = vpop.permute.xlu0 %853
        %855 = vrot.lane.b32.xlu0 %v842, 44
        %v856 = vpop.permute.xlu0 %855
        %857 = vrot.lane.b32.xlu0 %v850, 44
        %v858 = vpop.permute.xlu0 %857
        %vm859 = vcmask 359424
        %v860 = vsel %vm859, %v852, %v854
        %v861 = vsel %vm859, %v854, %v856
        %v862 = vsel %vm859, %v856, %v858
        %v866 = vmul.f32 %v845, %v860
        %v867 = vmul.f32 %v845, %v861
        %v868 = vmul.f32 %v845, %v862
        %v869 = vadd.f32 %v838, %v866
        %v870 = vadd.f32 %v839, %v867
        %v871 = vadd.f32 %v840, %v868
        %v872 = vld [vmem:[%s1] sm:$0xff]
        %vm873 = vcmask 31744
        %v875 = vsel %vm873, %v872, 0
        %vm877 = vcmask 1043456
        %v879 = vsel %vm877, %v869, 0
        %v882 = vsel %vm877, %v870, 0
        %v885 = vsel %vm877, %v871, 0
        %v887 = vand.u32 %v882, 4294901760
        %888 = vmatprep.subr.mxu0 %v887
        %v889 = vand.u32 %v879, 4294901760
        %890 = vmatpush1.msra.mxu0 %v889
        %891 = vmatprep.subr.mxu0 0.0
        %892 = vmatpush1.msra.mxu0 0.0
        %893 = vmatprep.subr.mxu0 0.0
        %894 = vmatpush1.msra.mxu0 0.0
        %895 = vmatprep.subr.mxu0 0.0
        %896 = vmatpush1.msra.mxu0 0.0
        %897 = vmatprep.subr.mxu0 0.0
        %898 = vmatpush1.msra.mxu0 0.0
        %899 = vmatprep.subr.mxu0 0.0
        %900 = vmatpush1.msra.mxu0 0.0
        %901 = vmatprep.subr.mxu0 0.0
        %902 = vmatpush1.msra.mxu0 0.0
        %903 = vmatprep.subr.mxu0 0.0
        %904 = vmatpush1.msra.mxu0 0.0
        %905 = vmatprep.subr.mxu0 0.0
        %906 = vmatpush1.msra.mxu0 0.0
        %907 = vmatprep.subr.mxu0 0.0
        %908 = vmatpush1.msra.mxu0 0.0
        %909 = vmatprep.subr.mxu0 0.0
        %910 = vmatpush1.msra.mxu0 0.0
        %911 = vmatprep.subr.mxu0 0.0
        %912 = vmatpush1.msra.mxu0 0.0
        %913 = vmatprep.subr.mxu0 0.0
        %914 = vmatpush1.msra.mxu0 0.0
        %915 = vmatprep.subr.mxu0 0.0
        %916 = vmatpush1.msra.mxu0 0.0
        %917 = vmatprep.subr.mxu0 0.0
        %918 = vmatpush1.msra.mxu0 0.0
        %919 = vmatprep.subr.mxu0 0.0
        %920 = vmatpush1.msra.mxu0 0.0
        %921 = vmatprep.subr.mxu0 0.0
        %922 = vmatpush1.msra.mxu0 0.0
        %923 = vmatprep.subr.mxu0 0.0
        %924 = vmatpush1.msra.mxu0 0.0
        %925 = vmatprep.subr.mxu0 0.0
        %926 = vmatpush1.msra.mxu0 0.0
        %927 = vmatprep.subr.mxu0 0.0
        %928 = vmatpush1.msra.mxu0 0.0
        %929 = vmatprep.subr.mxu0 0.0
        %930 = vmatpush1.msra.mxu0 0.0
        %931 = vmatprep.subr.mxu0 0.0
        %932 = vmatpush1.msra.mxu0 0.0
        %933 = vmatprep.subr.mxu0 0.0
        %934 = vmatpush1.msra.mxu0 0.0
        %935 = vmatprep.subr.mxu0 0.0
        %936 = vmatpush1.msra.mxu0 0.0
        %937 = vmatprep.subr.mxu0 0.0
        %938 = vmatpush1.msra.mxu0 0.0
        %939 = vmatprep.subr.mxu0 0.0
        %940 = vmatpush1.msra.mxu0 0.0
        %941 = vmatprep.subr.mxu0 0.0
        %942 = vmatpush1.msra.mxu0 0.0
        %943 = vmatprep.subr.mxu0 0.0
        %944 = vmatpush1.msra.mxu0 0.0
        %945 = vmatprep.subr.mxu0 0.0
        %946 = vmatpush1.msra.mxu0 0.0
        %947 = vmatprep.subr.mxu0 0.0
        %948 = vmatpush1.msra.mxu0 0.0
        %949 = vmatprep.subr.mxu0 0.0
        %950 = vmatpush1.msra.mxu0 0.0
        %951 = vmatprep.subr.mxu0 0.0
        %952 = vmatpush1.msra.mxu0 0.0
        %953 = vmatprep.mubr.f32.mxu0 0.0
        %v954 = vand.u32 %v875, 4294901760
        %v955 = vsub.f32 %v875, %v954
        %v956 = vand.u32 %v955, 4294901760
        %v957 = vsub.f32 %v955, %v956
        %v958 = vand.u32 %v957, 4294901760
        %959 = vmatmul.mubr.f32.gmra.mrb[0].mxu0 %v958
        %v960 = vpop.f32.mrb[0].mxu0
        %v961 = vadd.f32 0.0, %v960
        %v962 = vpop.f32.mrb[0].mxu0
        %v963 = vadd.f32 0.0, %v962
        %964 = vdwg.mxu0
        %v965 = vand.u32 %v882, 4294901760
        %v966 = vsub.f32 %v882, %v965
        %v967 = vand.u32 %v966, 4294901760
        %v968 = vsub.f32 %v966, %v967
        %v969 = vand.u32 %v968, 4294901760
        %970 = vmatprep.subr.mxu0 %v969
        %v971 = vand.u32 %v879, 4294901760
        %v972 = vsub.f32 %v879, %v971
        %v973 = vand.u32 %v972, 4294901760
        %v974 = vsub.f32 %v972, %v973
        %v975 = vand.u32 %v974, 4294901760
        %976 = vmatpush1.msra.mxu0 %v975
        %977 = vmatprep.subr.mxu0 0.0
        %978 = vmatpush1.msra.mxu0 0.0
        %979 = vmatprep.subr.mxu0 0.0
        %980 = vmatpush1.msra.mxu0 0.0
        %981 = vmatprep.subr.mxu0 0.0
        %982 = vmatpush1.msra.mxu0 0.0
        %983 = vmatprep.subr.mxu0 0.0
        %984 = vmatpush1.msra.mxu0 0.0
        %985 = vmatprep.subr.mxu0 0.0
        %986 = vmatpush1.msra.mxu0 0.0
        %987 = vmatprep.subr.mxu0 0.0
        %988 = vmatpush1.msra.mxu0 0.0
        %989 = vmatprep.subr.mxu0 0.0
        %990 = vmatpush1.msra.mxu0 0.0
        %991 = vmatprep.subr.mxu0 0.0
        %992 = vmatpush1.msra.mxu0 0.0
        %993 = vmatprep.subr.mxu0 0.0
        %994 = vmatpush1.msra.mxu0 0.0
        %995 = vmatprep.subr.mxu0 0.0
        %996 = vmatpush1.msra.mxu0 0.0
        %997 = vmatprep.subr.mxu0 0.0
        %998 = vmatpush1.msra.mxu0 0.0
        %999 = vmatprep.subr.mxu0 0.0
        %1000 = vmatpush1.msra.mxu0 0.0
        %1001 = vmatprep.subr.mxu0 0.0
        %1002 = vmatpush1.msra.mxu0 0.0
        %1003 = vmatprep.subr.mxu0 0.0
        %1004 = vmatpush1.msra.mxu0 0.0
        %1005 = vmatprep.subr.mxu0 0.0
        %1006 = vmatpush1.msra.mxu0 0.0
        %1007 = vmatprep.subr.mxu0 0.0
        %1008 = vmatpush1.msra.mxu0 0.0
        %1009 = vmatprep.subr.mxu0 0.0
        %1010 = vmatpush1.msra.mxu0 0.0
        %1011 = vmatprep.subr.mxu0 0.0
        %1012 = vmatpush1.msra.mxu0 0.0
        %1013 = vmatprep.subr.mxu0 0.0
        %1014 = vmatpush1.msra.mxu0 0.0
        %1015 = vmatprep.subr.mxu0 0.0
        %1016 = vmatpush1.msra.mxu0 0.0
        %1017 = vmatprep.subr.mxu0 0.0
        %1018 = vmatpush1.msra.mxu0 0.0
        %1019 = vmatprep.subr.mxu0 0.0
        %1020 = vmatpush1.msra.mxu0 0.0
        %1021 = vmatprep.subr.mxu0 0.0
        %1022 = vmatpush1.msra.mxu0 0.0
        %1023 = vmatprep.subr.mxu0 0.0
        %1024 = vmatpush1.msra.mxu0 0.0
        %1025 = vmatprep.subr.mxu0 0.0
        %1026 = vmatpush1.msra.mxu0 0.0
        %1027 = vmatprep.subr.mxu0 0.0
        %1028 = vmatpush1.msra.mxu0 0.0
        %1029 = vmatprep.subr.mxu0 0.0
        %1030 = vmatpush1.msra.mxu0 0.0
        %1031 = vmatprep.subr.mxu0 0.0
        %1032 = vmatpush1.msra.mxu0 0.0
        %1033 = vmatprep.subr.mxu0 0.0
        %1034 = vmatpush1.msra.mxu0 0.0
        %1035 = vmatprep.subr.mxu0 0.0
        %1036 = vmatpush1.msra.mxu0 0.0
        %1037 = vmatprep.subr.mxu0 0.0
        %1038 = vmatpush1.msra.mxu0 0.0
        %1039 = vmatprep.mubr.f32.mxu0 0.0
        %v1040 = vand.u32 %v875, 4294901760
        %1041 = vmatmul.mubr.f32.gmra.mrb[0].mxu0 %v1040
        %v1042 = vpop.f32.mrb[0].mxu0
        %v1043 = vadd.f32 %v961, %v1042
        %v1044 = vpop.f32.mrb[0].mxu0
        %v1045 = vadd.f32 %v963, %v1044
        %1046 = vdwg.mxu0
        %v1047 = vand.u32 %v882, 4294901760
        %v1048 = vsub.f32 %v882, %v1047
        %1049 = vmatprep.subr.mxu0 %v1048
        %v1050 = vand.u32 %v879, 4294901760
        %v1051 = vsub.f32 %v879, %v1050
        %1052 = vmatpush1.msra.mxu0 %v1051
        %1053 = vmatprep.subr.mxu0 0.0
        %1054 = vmatpush1.msra.mxu0 0.0
        %1055 = vmatprep.subr.mxu0 0.0
        %1056 = vmatpush1.msra.mxu0 0.0
        %1057 = vmatprep.subr.mxu0 0.0
        %1058 = vmatpush1.msra.mxu0 0.0
        %1059 = vmatprep.subr.mxu0 0.0
        %1060 = vmatpush1.msra.mxu0 0.0
        %1061 = vmatprep.subr.mxu0 0.0
        %1062 = vmatpush1.msra.mxu0 0.0
        %1063 = vmatprep.subr.mxu0 0.0
        %1064 = vmatpush1.msra.mxu0 0.0
        %1065 = vmatprep.subr.mxu0 0.0
        %1066 = vmatpush1.msra.mxu0 0.0
        %1067 = vmatprep.subr.mxu0 0.0
        %1068 = vmatpush1.msra.mxu0 0.0
        %1069 = vmatprep.subr.mxu0 0.0
        %1070 = vmatpush1.msra.mxu0 0.0
        %1071 = vmatprep.subr.mxu0 0.0
        %1072 = vmatpush1.msra.mxu0 0.0
        %1073 = vmatprep.subr.mxu0 0.0
        %1074 = vmatpush1.msra.mxu0 0.0
        %1075 = vmatprep.subr.mxu0 0.0
        %1076 = vmatpush1.msra.mxu0 0.0
        %1077 = vmatprep.subr.mxu0 0.0
        %1078 = vmatpush1.msra.mxu0 0.0
        %1079 = vmatprep.subr.mxu0 0.0
        %1080 = vmatpush1.msra.mxu0 0.0
        %1081 = vmatprep.subr.mxu0 0.0
        %1082 = vmatpush1.msra.mxu0 0.0
        %1083 = vmatprep.subr.mxu0 0.0
        %1084 = vmatpush1.msra.mxu0 0.0
        %1085 = vmatprep.subr.mxu0 0.0
        %1086 = vmatpush1.msra.mxu0 0.0
        %1087 = vmatprep.subr.mxu0 0.0
        %1088 = vmatpush1.msra.mxu0 0.0
        %1089 = vmatprep.subr.mxu0 0.0
        %1090 = vmatpush1.msra.mxu0 0.0
        %1091 = vmatprep.subr.mxu0 0.0
        %1092 = vmatpush1.msra.mxu0 0.0
        %1093 = vmatprep.subr.mxu0 0.0
        %1094 = vmatpush1.msra.mxu0 0.0
        %1095 = vmatprep.subr.mxu0 0.0
        %1096 = vmatpush1.msra.mxu0 0.0
        %1097 = vmatprep.subr.mxu0 0.0
        %1098 = vmatpush1.msra.mxu0 0.0
        %1099 = vmatprep.subr.mxu0 0.0
        %1100 = vmatpush1.msra.mxu0 0.0
        %1101 = vmatprep.subr.mxu0 0.0
        %1102 = vmatpush1.msra.mxu0 0.0
        %1103 = vmatprep.subr.mxu0 0.0
        %1104 = vmatpush1.msra.mxu0 0.0
        %1105 = vmatprep.subr.mxu0 0.0
        %1106 = vmatpush1.msra.mxu0 0.0
        %1107 = vmatprep.subr.mxu0 0.0
        %1108 = vmatpush1.msra.mxu0 0.0
        %1109 = vmatprep.subr.mxu0 0.0
        %1110 = vmatpush1.msra.mxu0 0.0
        %1111 = vmatprep.subr.mxu0 0.0
        %1112 = vmatpush1.msra.mxu0 0.0
        %1113 = vmatprep.subr.mxu0 0.0
        %1114 = vmatpush1.msra.mxu0 0.0
        %1115 = vmatprep.mubr.f32.mxu0 0.0
        %v1116 = vand.u32 %v875, 4294901760
        %v1117 = vsub.f32 %v875, %v1116
        %1118 = vmatmul.mubr.f32.gmra.mrb[0].mxu0 %v1117
        %v1119 = vpop.f32.mrb[0].mxu0
        %v1120 = vadd.f32 %v1043, %v1119
        %v1121 = vpop.f32.mrb[0].mxu0
        %v1122 = vadd.f32 %v1045, %v1121
        %1123 = vdwg.mxu0
        %v1124 = vand.u32 %v882, 4294901760
        %1125 = vmatprep.subr.mxu0 %v1124
        %v1126 = vand.u32 %v879, 4294901760
        %1127 = vmatpush1.msra.mxu0 %v1126
        %1128 = vmatprep.subr.mxu0 0.0
        %1129 = vmatpush1.msra.mxu0 0.0
        %1130 = vmatprep.subr.mxu0 0.0
        %1131 = vmatpush1.msra.mxu0 0.0
        %1132 = vmatprep.subr.mxu0 0.0
        %1133 = vmatpush1.msra.mxu0 0.0
        %1134 = vmatprep.subr.mxu0 0.0
        %1135 = vmatpush1.msra.mxu0 0.0
        %1136 = vmatprep.subr.mxu0 0.0
        %1137 = vmatpush1.msra.mxu0 0.0
        %1138 = vmatprep.subr.mxu0 0.0
        %1139 = vmatpush1.msra.mxu0 0.0
        %1140 = vmatprep.subr.mxu0 0.0
        %1141 = vmatpush1.msra.mxu0 0.0
        %1142 = vmatprep.subr.mxu0 0.0
        %1143 = vmatpush1.msra.mxu0 0.0
        %1144 = vmatprep.subr.mxu0 0.0
        %1145 = vmatpush1.msra.mxu0 0.0
        %1146 = vmatprep.subr.mxu0 0.0
        %1147 = vmatpush1.msra.mxu0 0.0
        %1148 = vmatprep.subr.mxu0 0.0
        %1149 = vmatpush1.msra.mxu0 0.0
        %1150 = vmatprep.subr.mxu0 0.0
        %1151 = vmatpush1.msra.mxu0 0.0
        %1152 = vmatprep.subr.mxu0 0.0
        %1153 = vmatpush1.msra.mxu0 0.0
        %1154 = vmatprep.subr.mxu0 0.0
        %1155 = vmatpush1.msra.mxu0 0.0
        %1156 = vmatprep.subr.mxu0 0.0
        %1157 = vmatpush1.msra.mxu0 0.0
        %1158 = vmatprep.subr.mxu0 0.0
        %1159 = vmatpush1.msra.mxu0 0.0
        %1160 = vmatprep.subr.mxu0 0.0
        %1161 = vmatpush1.msra.mxu0 0.0
        %1162 = vmatprep.subr.mxu0 0.0
        %1163 = vmatpush1.msra.mxu0 0.0
        %1164 = vmatprep.subr.mxu0 0.0
        %1165 = vmatpush1.msra.mxu0 0.0
        %1166 = vmatprep.subr.mxu0 0.0
        %1167 = vmatpush1.msra.mxu0 0.0
        %1168 = vmatprep.subr.mxu0 0.0
        %1169 = vmatpush1.msra.mxu0 0.0
        %1170 = vmatprep.subr.mxu0 0.0
        %1171 = vmatpush1.msra.mxu0 0.0
        %1172 = vmatprep.subr.mxu0 0.0
        %1173 = vmatpush1.msra.mxu0 0.0
        %1174 = vmatprep.subr.mxu0 0.0
        %1175 = vmatpush1.msra.mxu0 0.0
        %1176 = vmatprep.subr.mxu0 0.0
        %1177 = vmatpush1.msra.mxu0 0.0
        %1178 = vmatprep.subr.mxu0 0.0
        %1179 = vmatpush1.msra.mxu0 0.0
        %1180 = vmatprep.subr.mxu0 0.0
        %1181 = vmatpush1.msra.mxu0 0.0
        %1182 = vmatprep.subr.mxu0 0.0
        %1183 = vmatpush1.msra.mxu0 0.0
        %1184 = vmatprep.subr.mxu0 0.0
        %1185 = vmatpush1.msra.mxu0 0.0
        %1186 = vmatprep.subr.mxu0 0.0
        %1187 = vmatpush1.msra.mxu0 0.0
        %1188 = vmatprep.subr.mxu0 0.0
        %1189 = vmatpush1.msra.mxu0 0.0
        %1190 = vmatprep.mubr.f32.mxu0 0.0
        %v1191 = vand.u32 %v875, 4294901760
        %v1192 = vsub.f32 %v875, %v1191
        %v1193 = vand.u32 %v1192, 4294901760
        %1194 = vmatmul.mubr.f32.gmra.mrb[0].mxu0 %v1193
        %v1195 = vpop.f32.mrb[0].mxu0
        %v1196 = vadd.f32 %v1120, %v1195
        %v1197 = vpop.f32.mrb[0].mxu0
        %v1198 = vadd.f32 %v1122, %v1197
        %1199 = vdwg.mxu0
        %v1200 = vand.u32 %v882, 4294901760
        %v1201 = vsub.f32 %v882, %v1200
        %v1202 = vand.u32 %v1201, 4294901760
        %1203 = vmatprep.subr.mxu0 %v1202
        %v1204 = vand.u32 %v879, 4294901760
        %v1205 = vsub.f32 %v879, %v1204
        %v1206 = vand.u32 %v1205, 4294901760
        %1207 = vmatpush1.msra.mxu0 %v1206
        %1208 = vmatprep.subr.mxu0 0.0
        %1209 = vmatpush1.msra.mxu0 0.0
        %1210 = vmatprep.subr.mxu0 0.0
        %1211 = vmatpush1.msra.mxu0 0.0
        %1212 = vmatprep.subr.mxu0 0.0
        %1213 = vmatpush1.msra.mxu0 0.0
        %1214 = vmatprep.subr.mxu0 0.0
        %1215 = vmatpush1.msra.mxu0 0.0
        %1216 = vmatprep.subr.mxu0 0.0
        %1217 = vmatpush1.msra.mxu0 0.0
        %1218 = vmatprep.subr.mxu0 0.0
        %1219 = vmatpush1.msra.mxu0 0.0
        %1220 = vmatprep.subr.mxu0 0.0
        %1221 = vmatpush1.msra.mxu0 0.0
        %1222 = vmatprep.subr.mxu0 0.0
        %1223 = vmatpush1.msra.mxu0 0.0
        %1224 = vmatprep.subr.mxu0 0.0
        %1225 = vmatpush1.msra.mxu0 0.0
        %1226 = vmatprep.subr.mxu0 0.0
        %1227 = vmatpush1.msra.mxu0 0.0
        %1228 = vmatprep.subr.mxu0 0.0
        %1229 = vmatpush1.msra.mxu0 0.0
        %1230 = vmatprep.subr.mxu0 0.0
        %1231 = vmatpush1.msra.mxu0 0.0
        %1232 = vmatprep.subr.mxu0 0.0
        %1233 = vmatpush1.msra.mxu0 0.0
        %1234 = vmatprep.subr.mxu0 0.0
        %1235 = vmatpush1.msra.mxu0 0.0
        %1236 = vmatprep.subr.mxu0 0.0
        %1237 = vmatpush1.msra.mxu0 0.0
        %1238 = vmatprep.subr.mxu0 0.0
        %1239 = vmatpush1.msra.mxu0 0.0
        %1240 = vmatprep.subr.mxu0 0.0
        %1241 = vmatpush1.msra.mxu0 0.0
        %1242 = vmatprep.subr.mxu0 0.0
        %1243 = vmatpush1.msra.mxu0 0.0
        %1244 = vmatprep.subr.mxu0 0.0
        %1245 = vmatpush1.msra.mxu0 0.0
        %1246 = vmatprep.subr.mxu0 0.0
        %1247 = vmatpush1.msra.mxu0 0.0
        %1248 = vmatprep.subr.mxu0 0.0
        %1249 = vmatpush1.msra.mxu0 0.0
        %1250 = vmatprep.subr.mxu0 0.0
        %1251 = vmatpush1.msra.mxu0 0.0
        %1252 = vmatprep.subr.mxu0 0.0
        %1253 = vmatpush1.msra.mxu0 0.0
        %1254 = vmatprep.subr.mxu0 0.0
        %1255 = vmatpush1.msra.mxu0 0.0
        %1256 = vmatprep.subr.mxu0 0.0
        %1257 = vmatpush1.msra.mxu0 0.0
        %1258 = vmatprep.subr.mxu0 0.0
        %1259 = vmatpush1.msra.mxu0 0.0
        %1260 = vmatprep.subr.mxu0 0.0
        %1261 = vmatpush1.msra.mxu0 0.0
        %1262 = vmatprep.subr.mxu0 0.0
        %1263 = vmatpush1.msra.mxu0 0.0
        %1264 = vmatprep.subr.mxu0 0.0
        %1265 = vmatpush1.msra.mxu0 0.0
        %1266 = vmatprep.subr.mxu0 0.0
        %1267 = vmatpush1.msra.mxu0 0.0
        %1268 = vmatprep.subr.mxu0 0.0
        %1269 = vmatpush1.msra.mxu0 0.0
        %1270 = vmatprep.mubr.f32.mxu0 0.0
        %v1271 = vand.u32 %v875, 4294901760
        %1272 = vmatmul.mubr.f32.gmra.mrb[0].mxu0 %v1271
        %v1273 = vpop.f32.mrb[0].mxu0
        %v1274 = vadd.f32 %v1196, %v1273
        %v1275 = vpop.f32.mrb[0].mxu0
        %v1276 = vadd.f32 %v1198, %v1275
        %1277 = vdwg.mxu0
        %v1278 = vand.u32 %v882, 4294901760
        %1279 = vmatprep.subr.mxu0 %v1278
        %v1280 = vand.u32 %v879, 4294901760
        %1281 = vmatpush1.msra.mxu0 %v1280
        %1282 = vmatprep.subr.mxu0 0.0
        %1283 = vmatpush1.msra.mxu0 0.0
        %1284 = vmatprep.subr.mxu0 0.0
        %1285 = vmatpush1.msra.mxu0 0.0
        %1286 = vmatprep.subr.mxu0 0.0
        %1287 = vmatpush1.msra.mxu0 0.0
        %1288 = vmatprep.subr.mxu0 0.0
        %1289 = vmatpush1.msra.mxu0 0.0
        %1290 = vmatprep.subr.mxu0 0.0
        %1291 = vmatpush1.msra.mxu0 0.0
        %1292 = vmatprep.subr.mxu0 0.0
        %1293 = vmatpush1.msra.mxu0 0.0
        %1294 = vmatprep.subr.mxu0 0.0
        %1295 = vmatpush1.msra.mxu0 0.0
        %1296 = vmatprep.subr.mxu0 0.0
        %1297 = vmatpush1.msra.mxu0 0.0
        %1298 = vmatprep.subr.mxu0 0.0
        %1299 = vmatpush1.msra.mxu0 0.0
        %1300 = vmatprep.subr.mxu0 0.0
        %1301 = vmatpush1.msra.mxu0 0.0
        %1302 = vmatprep.subr.mxu0 0.0
        %1303 = vmatpush1.msra.mxu0 0.0
        %1304 = vmatprep.subr.mxu0 0.0
        %1305 = vmatpush1.msra.mxu0 0.0
        %1306 = vmatprep.subr.mxu0 0.0
        %1307 = vmatpush1.msra.mxu0 0.0
        %1308 = vmatprep.subr.mxu0 0.0
        %1309 = vmatpush1.msra.mxu0 0.0
        %1310 = vmatprep.subr.mxu0 0.0
        %1311 = vmatpush1.msra.mxu0 0.0
        %1312 = vmatprep.subr.mxu0 0.0
        %1313 = vmatpush1.msra.mxu0 0.0
        %1314 = vmatprep.subr.mxu0 0.0
        %1315 = vmatpush1.msra.mxu0 0.0
        %1316 = vmatprep.subr.mxu0 0.0
        %1317 = vmatpush1.msra.mxu0 0.0
        %1318 = vmatprep.subr.mxu0 0.0
        %1319 = vmatpush1.msra.mxu0 0.0
        %1320 = vmatprep.subr.mxu0 0.0
        %1321 = vmatpush1.msra.mxu0 0.0
        %1322 = vmatprep.subr.mxu0 0.0
        %1323 = vmatpush1.msra.mxu0 0.0
        %1324 = vmatprep.subr.mxu0 0.0
        %1325 = vmatpush1.msra.mxu0 0.0
        %1326 = vmatprep.subr.mxu0 0.0
        %1327 = vmatpush1.msra.mxu0 0.0
        %1328 = vmatprep.subr.mxu0 0.0
        %1329 = vmatpush1.msra.mxu0 0.0
        %1330 = vmatprep.subr.mxu0 0.0
        %1331 = vmatpush1.msra.mxu0 0.0
        %1332 = vmatprep.subr.mxu0 0.0
        %1333 = vmatpush1.msra.mxu0 0.0
        %1334 = vmatprep.subr.mxu0 0.0
        %1335 = vmatpush1.msra.mxu0 0.0
        %1336 = vmatprep.subr.mxu0 0.0
        %1337 = vmatpush1.msra.mxu0 0.0
        %1338 = vmatprep.subr.mxu0 0.0
        %1339 = vmatpush1.msra.mxu0 0.0
        %1340 = vmatprep.subr.mxu0 0.0
        %1341 = vmatpush1.msra.mxu0 0.0
        %1342 = vmatprep.subr.mxu0 0.0
        %1343 = vmatpush1.msra.mxu0 0.0
        %1344 = vmatprep.mubr.f32.mxu0 0.0
        %v1345 = vand.u32 %v875, 4294901760
        %1346 = vmatmul.mubr.f32.gmra.mrb[0].mxu0 %v1345
        %v1347 = vpop.f32.mrb[0].mxu0
        %v1348 = vadd.f32 %v1274, %v1347
        %v1349 = vpop.f32.mrb[0].mxu0
        %v1350 = vadd.f32 %v1276, %v1349
        %1351 = vdwg.mxu0
        %1352 = vmatprep.subr.mxu0 0.0
        %v1353 = vand.u32 %v885, 4294901760
        %1354 = vmatpush1.msra.mxu0 %v1353
        %1355 = vmatprep.subr.mxu0 0.0
        %1356 = vmatpush1.msra.mxu0 0.0
        %1357 = vmatprep.subr.mxu0 0.0
        %1358 = vmatpush1.msra.mxu0 0.0
        %1359 = vmatprep.subr.mxu0 0.0
        %1360 = vmatpush1.msra.mxu0 0.0
        %1361 = vmatprep.subr.mxu0 0.0
        %1362 = vmatpush1.msra.mxu0 0.0
        %1363 = vmatprep.subr.mxu0 0.0
        %1364 = vmatpush1.msra.mxu0 0.0
        %1365 = vmatprep.subr.mxu0 0.0
        %1366 = vmatpush1.msra.mxu0 0.0
        %1367 = vmatprep.subr.mxu0 0.0
        %1368 = vmatpush1.msra.mxu0 0.0
        %1369 = vmatprep.subr.mxu0 0.0
        %1370 = vmatpush1.msra.mxu0 0.0
        %1371 = vmatprep.subr.mxu0 0.0
        %1372 = vmatpush1.msra.mxu0 0.0
        %1373 = vmatprep.subr.mxu0 0.0
        %1374 = vmatpush1.msra.mxu0 0.0
        %1375 = vmatprep.subr.mxu0 0.0
        %1376 = vmatpush1.msra.mxu0 0.0
        %1377 = vmatprep.subr.mxu0 0.0
        %1378 = vmatpush1.msra.mxu0 0.0
        %1379 = vmatprep.subr.mxu0 0.0
        %1380 = vmatpush1.msra.mxu0 0.0
        %1381 = vmatprep.subr.mxu0 0.0
        %1382 = vmatpush1.msra.mxu0 0.0
        %1383 = vmatprep.subr.mxu0 0.0
        %1384 = vmatpush1.msra.mxu0 0.0
        %1385 = vmatprep.subr.mxu0 0.0
        %1386 = vmatpush1.msra.mxu0 0.0
        %1387 = vmatprep.subr.mxu0 0.0
        %1388 = vmatpush1.msra.mxu0 0.0
        %1389 = vmatprep.subr.mxu0 0.0
        %1390 = vmatpush1.msra.mxu0 0.0
        %1391 = vmatprep.subr.mxu0 0.0
        %1392 = vmatpush1.msra.mxu0 0.0
        %1393 = vmatprep.subr.mxu0 0.0
        %1394 = vmatpush1.msra.mxu0 0.0
        %1395 = vmatprep.subr.mxu0 0.0
        %1396 = vmatpush1.msra.mxu0 0.0
        %1397 = vmatprep.subr.mxu0 0.0
        %1398 = vmatpush1.msra.mxu0 0.0
        %1399 = vmatprep.subr.mxu0 0.0
        %1400 = vmatpush1.msra.mxu0 0.0
        %1401 = vmatprep.subr.mxu0 0.0
        %1402 = vmatpush1.msra.mxu0 0.0
        %1403 = vmatprep.subr.mxu0 0.0
        %1404 = vmatpush1.msra.mxu0 0.0
        %1405 = vmatprep.subr.mxu0 0.0
        %1406 = vmatpush1.msra.mxu0 0.0
        %1407 = vmatprep.subr.mxu0 0.0
        %1408 = vmatpush1.msra.mxu0 0.0
        %1409 = vmatprep.subr.mxu0 0.0
        %1410 = vmatpush1.msra.mxu0 0.0
        %1411 = vmatprep.subr.mxu0 0.0
        %1412 = vmatpush1.msra.mxu0 0.0
        %1413 = vmatprep.subr.mxu0 0.0
        %1414 = vmatpush1.msra.mxu0 0.0
        %1415 = vmatprep.subr.mxu0 0.0
        %1416 = vmatpush1.msra.mxu0 0.0
        %1417 = vmatprep.mubr.f32.mxu0 0.0
        %v1418 = vand.u32 %v875, 4294901760
        %v1419 = vsub.f32 %v875, %v1418
        %v1420 = vand.u32 %v1419, 4294901760
        %v1421 = vsub.f32 %v1419, %v1420
        %v1422 = vand.u32 %v1421, 4294901760
        %1423 = vmatmul.mubr.f32.gmra.mrb[0].mxu0 %v1422
        %v1424 = vpop.f32.mrb[0].mxu0
        %v1425 = vadd.f32 0.0, %v1424
        %v1426 = vpop.f32.mrb[0].mxu0
        %1427 = vdwg.mxu0
        %1428 = vmatprep.subr.mxu0 0.0
        %v1429 = vand.u32 %v885, 4294901760
        %v1430 = vsub.f32 %v885, %v1429
        %v1431 = vand.u32 %v1430, 4294901760
        %v1432 = vsub.f32 %v1430, %v1431
        %v1433 = vand.u32 %v1432, 4294901760
        %1434 = vmatpush1.msra.mxu0 %v1433
        %1435 = vmatprep.subr.mxu0 0.0
        %1436 = vmatpush1.msra.mxu0 0.0
        %1437 = vmatprep.subr.mxu0 0.0
        %1438 = vmatpush1.msra.mxu0 0.0
        %1439 = vmatprep.subr.mxu0 0.0
        %1440 = vmatpush1.msra.mxu0 0.0
        %1441 = vmatprep.subr.mxu0 0.0
        %1442 = vmatpush1.msra.mxu0 0.0
        %1443 = vmatprep.subr.mxu0 0.0
        %1444 = vmatpush1.msra.mxu0 0.0
        %1445 = vmatprep.subr.mxu0 0.0
        %1446 = vmatpush1.msra.mxu0 0.0
        %1447 = vmatprep.subr.mxu0 0.0
        %1448 = vmatpush1.msra.mxu0 0.0
        %1449 = vmatprep.subr.mxu0 0.0
        %1450 = vmatpush1.msra.mxu0 0.0
        %1451 = vmatprep.subr.mxu0 0.0
        %1452 = vmatpush1.msra.mxu0 0.0
        %1453 = vmatprep.subr.mxu0 0.0
        %1454 = vmatpush1.msra.mxu0 0.0
        %1455 = vmatprep.subr.mxu0 0.0
        %1456 = vmatpush1.msra.mxu0 0.0
        %1457 = vmatprep.subr.mxu0 0.0
        %1458 = vmatpush1.msra.mxu0 0.0
        %1459 = vmatprep.subr.mxu0 0.0
        %1460 = vmatpush1.msra.mxu0 0.0
        %1461 = vmatprep.subr.mxu0 0.0
        %1462 = vmatpush1.msra.mxu0 0.0
        %1463 = vmatprep.subr.mxu0 0.0
        %1464 = vmatpush1.msra.mxu0 0.0
        %1465 = vmatprep.subr.mxu0 0.0
        %1466 = vmatpush1.msra.mxu0 0.0
        %1467 = vmatprep.subr.mxu0 0.0
        %1468 = vmatpush1.msra.mxu0 0.0
        %1469 = vmatprep.subr.mxu0 0.0
        %1470 = vmatpush1.msra.mxu0 0.0
        %1471 = vmatprep.subr.mxu0 0.0
        %1472 = vmatpush1.msra.mxu0 0.0
        %1473 = vmatprep.subr.mxu0 0.0
        %1474 = vmatpush1.msra.mxu0 0.0
        %1475 = vmatprep.subr.mxu0 0.0
        %1476 = vmatpush1.msra.mxu0 0.0
        %1477 = vmatprep.subr.mxu0 0.0
        %1478 = vmatpush1.msra.mxu0 0.0
        %1479 = vmatprep.subr.mxu0 0.0
        %1480 = vmatpush1.msra.mxu0 0.0
        %1481 = vmatprep.subr.mxu0 0.0
        %1482 = vmatpush1.msra.mxu0 0.0
        %1483 = vmatprep.subr.mxu0 0.0
        %1484 = vmatpush1.msra.mxu0 0.0
        %1485 = vmatprep.subr.mxu0 0.0
        %1486 = vmatpush1.msra.mxu0 0.0
        %1487 = vmatprep.subr.mxu0 0.0
        %1488 = vmatpush1.msra.mxu0 0.0
        %1489 = vmatprep.subr.mxu0 0.0
        %1490 = vmatpush1.msra.mxu0 0.0
        %1491 = vmatprep.subr.mxu0 0.0
        %1492 = vmatpush1.msra.mxu0 0.0
        %1493 = vmatprep.subr.mxu0 0.0
        %1494 = vmatpush1.msra.mxu0 0.0
        %1495 = vmatprep.subr.mxu0 0.0
        %1496 = vmatpush1.msra.mxu0 0.0
        %1497 = vmatprep.mubr.f32.mxu0 0.0
        %v1498 = vand.u32 %v875, 4294901760
        %1499 = vmatmul.mubr.f32.gmra.mrb[0].mxu0 %v1498
        %v1500 = vpop.f32.mrb[0].mxu0
        %v1501 = vadd.f32 %v1425, %v1500
        %v1502 = vpop.f32.mrb[0].mxu0
        %1503 = vdwg.mxu0
        %1504 = vmatprep.subr.mxu0 0.0
        %v1505 = vand.u32 %v885, 4294901760
        %v1506 = vsub.f32 %v885, %v1505
        %1507 = vmatpush1.msra.mxu0 %v1506
        %1508 = vmatprep.subr.mxu0 0.0
        %1509 = vmatpush1.msra.mxu0 0.0
        %1510 = vmatprep.subr.mxu0 0.0
        %1511 = vmatpush1.msra.mxu0 0.0
        %1512 = vmatprep.subr.mxu0 0.0
        %1513 = vmatpush1.msra.mxu0 0.0
        %1514 = vmatprep.subr.mxu0 0.0
        %1515 = vmatpush1.msra.mxu0 0.0
        %1516 = vmatprep.subr.mxu0 0.0
        %1517 = vmatpush1.msra.mxu0 0.0
        %1518 = vmatprep.subr.mxu0 0.0
        %1519 = vmatpush1.msra.mxu0 0.0
        %1520 = vmatprep.subr.mxu0 0.0
        %1521 = vmatpush1.msra.mxu0 0.0
        %1522 = vmatprep.subr.mxu0 0.0
        %1523 = vmatpush1.msra.mxu0 0.0
        %1524 = vmatprep.subr.mxu0 0.0
        %1525 = vmatpush1.msra.mxu0 0.0
        %1526 = vmatprep.subr.mxu0 0.0
        %1527 = vmatpush1.msra.mxu0 0.0
        %1528 = vmatprep.subr.mxu0 0.0
        %1529 = vmatpush1.msra.mxu0 0.0
        %1530 = vmatprep.subr.mxu0 0.0
        %1531 = vmatpush1.msra.mxu0 0.0
        %1532 = vmatprep.subr.mxu0 0.0
        %1533 = vmatpush1.msra.mxu0 0.0
        %1534 = vmatprep.subr.mxu0 0.0
        %1535 = vmatpush1.msra.mxu0 0.0
        %1536 = vmatprep.subr.mxu0 0.0
        %1537 = vmatpush1.msra.mxu0 0.0
        %1538 = vmatprep.subr.mxu0 0.0
        %1539 = vmatpush1.msra.mxu0 0.0
        %1540 = vmatprep.subr.mxu0 0.0
        %1541 = vmatpush1.msra.mxu0 0.0
        %1542 = vmatprep.subr.mxu0 0.0
        %1543 = vmatpush1.msra.mxu0 0.0
        %1544 = vmatprep.subr.mxu0 0.0
        %1545 = vmatpush1.msra.mxu0 0.0
        %1546 = vmatprep.subr.mxu0 0.0
        %1547 = vmatpush1.msra.mxu0 0.0
        %1548 = vmatprep.subr.mxu0 0.0
        %1549 = vmatpush1.msra.mxu0 0.0
        %1550 = vmatprep.subr.mxu0 0.0
        %1551 = vmatpush1.msra.mxu0 0.0
        %1552 = vmatprep.subr.mxu0 0.0
        %1553 = vmatpush1.msra.mxu0 0.0
        %1554 = vmatprep.subr.mxu0 0.0
        %1555 = vmatpush1.msra.mxu0 0.0
        %1556 = vmatprep.subr.mxu0 0.0
        %1557 = vmatpush1.msra.mxu0 0.0
        %1558 = vmatprep.subr.mxu0 0.0
        %1559 = vmatpush1.msra.mxu0 0.0
        %1560 = vmatprep.subr.mxu0 0.0
        %1561 = vmatpush1.msra.mxu0 0.0
        %1562 = vmatprep.subr.mxu0 0.0
        %1563 = vmatpush1.msra.mxu0 0.0
        %1564 = vmatprep.subr.mxu0 0.0
        %1565 = vmatpush1.msra.mxu0 0.0
        %1566 = vmatprep.subr.mxu0 0.0
        %1567 = vmatpush1.msra.mxu0 0.0
        %1568 = vmatprep.subr.mxu0 0.0
        %1569 = vmatpush1.msra.mxu0 0.0
        %1570 = vmatprep.mubr.f32.mxu0 0.0
        %v1571 = vand.u32 %v875, 4294901760
        %v1572 = vsub.f32 %v875, %v1571
        %1573 = vmatmul.mubr.f32.gmra.mrb[0].mxu0 %v1572
        %v1574 = vpop.f32.mrb[0].mxu0
        %v1575 = vadd.f32 %v1501, %v1574
        %v1576 = vpop.f32.mrb[0].mxu0
        %1577 = vdwg.mxu0
        %1578 = vmatprep.subr.mxu0 0.0
        %v1579 = vand.u32 %v885, 4294901760
        %1580 = vmatpush1.msra.mxu0 %v1579
        %1581 = vmatprep.subr.mxu0 0.0
        %1582 = vmatpush1.msra.mxu0 0.0
        %1583 = vmatprep.subr.mxu0 0.0
        %1584 = vmatpush1.msra.mxu0 0.0
        %1585 = vmatprep.subr.mxu0 0.0
        %1586 = vmatpush1.msra.mxu0 0.0
        %1587 = vmatprep.subr.mxu0 0.0
        %1588 = vmatpush1.msra.mxu0 0.0
        %1589 = vmatprep.subr.mxu0 0.0
        %1590 = vmatpush1.msra.mxu0 0.0
        %1591 = vmatprep.subr.mxu0 0.0
        %1592 = vmatpush1.msra.mxu0 0.0
        %1593 = vmatprep.subr.mxu0 0.0
        %1594 = vmatpush1.msra.mxu0 0.0
        %1595 = vmatprep.subr.mxu0 0.0
        %1596 = vmatpush1.msra.mxu0 0.0
        %1597 = vmatprep.subr.mxu0 0.0
        %1598 = vmatpush1.msra.mxu0 0.0
        %1599 = vmatprep.subr.mxu0 0.0
        %1600 = vmatpush1.msra.mxu0 0.0
        %1601 = vmatprep.subr.mxu0 0.0
        %1602 = vmatpush1.msra.mxu0 0.0
        %1603 = vmatprep.subr.mxu0 0.0
        %1604 = vmatpush1.msra.mxu0 0.0
        %1605 = vmatprep.subr.mxu0 0.0
        %1606 = vmatpush1.msra.mxu0 0.0
        %1607 = vmatprep.subr.mxu0 0.0
        %1608 = vmatpush1.msra.mxu0 0.0
        %1609 = vmatprep.subr.mxu0 0.0
        %1610 = vmatpush1.msra.mxu0 0.0
        %1611 = vmatprep.subr.mxu0 0.0
        %1612 = vmatpush1.msra.mxu0 0.0
        %1613 = vmatprep.subr.mxu0 0.0
        %1614 = vmatpush1.msra.mxu0 0.0
        %1615 = vmatprep.subr.mxu0 0.0
        %1616 = vmatpush1.msra.mxu0 0.0
        %1617 = vmatprep.subr.mxu0 0.0
        %1618 = vmatpush1.msra.mxu0 0.0
        %1619 = vmatprep.subr.mxu0 0.0
        %1620 = vmatpush1.msra.mxu0 0.0
        %1621 = vmatprep.subr.mxu0 0.0
        %1622 = vmatpush1.msra.mxu0 0.0
        %1623 = vmatprep.subr.mxu0 0.0
        %1624 = vmatpush1.msra.mxu0 0.0
        %1625 = vmatprep.subr.mxu0 0.0
        %1626 = vmatpush1.msra.mxu0 0.0
        %1627 = vmatprep.subr.mxu0 0.0
        %1628 = vmatpush1.msra.mxu0 0.0
        %1629 = vmatprep.subr.mxu0 0.0
        %1630 = vmatpush1.msra.mxu0 0.0
        %1631 = vmatprep.subr.mxu0 0.0
        %1632 = vmatpush1.msra.mxu0 0.0
        %1633 = vmatprep.subr.mxu0 0.0
        %1634 = vmatpush1.msra.mxu0 0.0
        %1635 = vmatprep.subr.mxu0 0.0
        %1636 = vmatpush1.msra.mxu0 0.0
        %1637 = vmatprep.subr.mxu0 0.0
        %1638 = vmatpush1.msra.mxu0 0.0
        %1639 = vmatprep.subr.mxu0 0.0
        %1640 = vmatpush1.msra.mxu0 0.0
        %1641 = vmatprep.subr.mxu0 0.0
        %1642 = vmatpush1.msra.mxu0 0.0
        %1643 = vmatprep.mubr.f32.mxu0 0.0
        %v1644 = vand.u32 %v875, 4294901760
        %v1645 = vsub.f32 %v875, %v1644
        %v1646 = vand.u32 %v1645, 4294901760
        %1647 = vmatmul.mubr.f32.gmra.mrb[0].mxu0 %v1646
        %v1648 = vpop.f32.mrb[0].mxu0
        %v1649 = vadd.f32 %v1575, %v1648
        %v1650 = vpop.f32.mrb[0].mxu0
        %1651 = vdwg.mxu0
        %1652 = vmatprep.subr.mxu0 0.0
        %v1653 = vand.u32 %v885, 4294901760
        %v1654 = vsub.f32 %v885, %v1653
        %v1655 = vand.u32 %v1654, 4294901760
        %1656 = vmatpush1.msra.mxu0 %v1655
        %1657 = vmatprep.subr.mxu0 0.0
        %1658 = vmatpush1.msra.mxu0 0.0
        %1659 = vmatprep.subr.mxu0 0.0
        %1660 = vmatpush1.msra.mxu0 0.0
        %1661 = vmatprep.subr.mxu0 0.0
        %1662 = vmatpush1.msra.mxu0 0.0
        %1663 = vmatprep.subr.mxu0 0.0
        %1664 = vmatpush1.msra.mxu0 0.0
        %1665 = vmatprep.subr.mxu0 0.0
        %1666 = vmatpush1.msra.mxu0 0.0
        %1667 = vmatprep.subr.mxu0 0.0
        %1668 = vmatpush1.msra.mxu0 0.0
        %1669 = vmatprep.subr.mxu0 0.0
        %1670 = vmatpush1.msra.mxu0 0.0
        %1671 = vmatprep.subr.mxu0 0.0
        %1672 = vmatpush1.msra.mxu0 0.0
        %1673 = vmatprep.subr.mxu0 0.0
        %1674 = vmatpush1.msra.mxu0 0.0
        %1675 = vmatprep.subr.mxu0 0.0
        %1676 = vmatpush1.msra.mxu0 0.0
        %1677 = vmatprep.subr.mxu0 0.0
        %1678 = vmatpush1.msra.mxu0 0.0
        %1679 = vmatprep.subr.mxu0 0.0
        %1680 = vmatpush1.msra.mxu0 0.0
        %1681 = vmatprep.subr.mxu0 0.0
        %1682 = vmatpush1.msra.mxu0 0.0
        %1683 = vmatprep.subr.mxu0 0.0
        %1684 = vmatpush1.msra.mxu0 0.0
        %1685 = vmatprep.subr.mxu0 0.0
        %1686 = vmatpush1.msra.mxu0 0.0
        %1687 = vmatprep.subr.mxu0 0.0
        %1688 = vmatpush1.msra.mxu0 0.0
        %1689 = vmatprep.subr.mxu0 0.0
        %1690 = vmatpush1.msra.mxu0 0.0
        %1691 = vmatprep.subr.mxu0 0.0
        %1692 = vmatpush1.msra.mxu0 0.0
        %1693 = vmatprep.subr.mxu0 0.0
        %1694 = vmatpush1.msra.mxu0 0.0
        %1695 = vmatprep.subr.mxu0 0.0
        %1696 = vmatpush1.msra.mxu0 0.0
        %1697 = vmatprep.subr.mxu0 0.0
        %1698 = vmatpush1.msra.mxu0 0.0
        %1699 = vmatprep.subr.mxu0 0.0
        %1700 = vmatpush1.msra.mxu0 0.0
        %1701 = vmatprep.subr.mxu0 0.0
        %1702 = vmatpush1.msra.mxu0 0.0
        %1703 = vmatprep.subr.mxu0 0.0
        %1704 = vmatpush1.msra.mxu0 0.0
        %1705 = vmatprep.subr.mxu0 0.0
        %1706 = vmatpush1.msra.mxu0 0.0
        %1707 = vmatprep.subr.mxu0 0.0
        %1708 = vmatpush1.msra.mxu0 0.0
        %1709 = vmatprep.subr.mxu0 0.0
        %1710 = vmatpush1.msra.mxu0 0.0
        %1711 = vmatprep.subr.mxu0 0.0
        %1712 = vmatpush1.msra.mxu0 0.0
        %1713 = vmatprep.subr.mxu0 0.0
        %1714 = vmatpush1.msra.mxu0 0.0
        %1715 = vmatprep.subr.mxu0 0.0
        %1716 = vmatpush1.msra.mxu0 0.0
        %1717 = vmatprep.subr.mxu0 0.0
        %1718 = vmatpush1.msra.mxu0 0.0
        %1719 = vmatprep.mubr.f32.mxu0 0.0
        %v1720 = vand.u32 %v875, 4294901760
        %1721 = vmatmul.mubr.f32.gmra.mrb[0].mxu0 %v1720
        %v1722 = vpop.f32.mrb[0].mxu0
        %v1723 = vadd.f32 %v1649, %v1722
        %v1724 = vpop.f32.mrb[0].mxu0
        %1725 = vdwg.mxu0
        %1726 = vmatprep.subr.mxu0 0.0
        %v1727 = vand.u32 %v885, 4294901760
        %1728 = vmatpush1.msra.mxu0 %v1727
        %1729 = vmatprep.subr.mxu0 0.0
        %1730 = vmatpush1.msra.mxu0 0.0
        %1731 = vmatprep.subr.mxu0 0.0
        %1732 = vmatpush1.msra.mxu0 0.0
        %1733 = vmatprep.subr.mxu0 0.0
        %1734 = vmatpush1.msra.mxu0 0.0
        %1735 = vmatprep.subr.mxu0 0.0
        %1736 = vmatpush1.msra.mxu0 0.0
        %1737 = vmatprep.subr.mxu0 0.0
        %1738 = vmatpush1.msra.mxu0 0.0
        %1739 = vmatprep.subr.mxu0 0.0
        %1740 = vmatpush1.msra.mxu0 0.0
        %1741 = vmatprep.subr.mxu0 0.0
        %1742 = vmatpush1.msra.mxu0 0.0
        %1743 = vmatprep.subr.mxu0 0.0
        %1744 = vmatpush1.msra.mxu0 0.0
        %1745 = vmatprep.subr.mxu0 0.0
        %1746 = vmatpush1.msra.mxu0 0.0
        %1747 = vmatprep.subr.mxu0 0.0
        %1748 = vmatpush1.msra.mxu0 0.0
        %1749 = vmatprep.subr.mxu0 0.0
        %1750 = vmatpush1.msra.mxu0 0.0
        %1751 = vmatprep.subr.mxu0 0.0
        %1752 = vmatpush1.msra.mxu0 0.0
        %1753 = vmatprep.subr.mxu0 0.0
        %1754 = vmatpush1.msra.mxu0 0.0
        %1755 = vmatprep.subr.mxu0 0.0
        %1756 = vmatpush1.msra.mxu0 0.0
        %1757 = vmatprep.subr.mxu0 0.0
        %1758 = vmatpush1.msra.mxu0 0.0
        %1759 = vmatprep.subr.mxu0 0.0
        %1760 = vmatpush1.msra.mxu0 0.0
        %1761 = vmatprep.subr.mxu0 0.0
        %1762 = vmatpush1.msra.mxu0 0.0
        %1763 = vmatprep.subr.mxu0 0.0
        %1764 = vmatpush1.msra.mxu0 0.0
        %1765 = vmatprep.subr.mxu0 0.0
        %1766 = vmatpush1.msra.mxu0 0.0
        %1767 = vmatprep.subr.mxu0 0.0
        %1768 = vmatpush1.msra.mxu0 0.0
        %1769 = vmatprep.subr.mxu0 0.0
        %1770 = vmatpush1.msra.mxu0 0.0
        %1771 = vmatprep.subr.mxu0 0.0
        %1772 = vmatpush1.msra.mxu0 0.0
        %1773 = vmatprep.subr.mxu0 0.0
        %1774 = vmatpush1.msra.mxu0 0.0
        %1775 = vmatprep.subr.mxu0 0.0
        %1776 = vmatpush1.msra.mxu0 0.0
        %1777 = vmatprep.subr.mxu0 0.0
        %1778 = vmatpush1.msra.mxu0 0.0
        %1779 = vmatprep.subr.mxu0 0.0
        %1780 = vmatpush1.msra.mxu0 0.0
        %1781 = vmatprep.subr.mxu0 0.0
        %1782 = vmatpush1.msra.mxu0 0.0
        %1783 = vmatprep.subr.mxu0 0.0
        %1784 = vmatpush1.msra.mxu0 0.0
        %1785 = vmatprep.subr.mxu0 0.0
        %1786 = vmatpush1.msra.mxu0 0.0
        %1787 = vmatprep.subr.mxu0 0.0
        %1788 = vmatpush1.msra.mxu0 0.0
        %1789 = vmatprep.subr.mxu0 0.0
        %1790 = vmatpush1.msra.mxu0 0.0
        %1791 = vmatprep.mubr.f32.mxu0 0.0
        %v1792 = vand.u32 %v875, 4294901760
        %1793 = vmatmul.mubr.f32.gmra.mrb[0].mxu0 %v1792
        %v1794 = vpop.f32.mrb[0].mxu0
        %v1795 = vadd.f32 %v1723, %v1794
        %v1796 = vpop.f32.mrb[0].mxu0
        %1797 = vdwg.mxu0
        %1798 = vst [vmem:[%s186] sm:$0xff] %v1348
        %1799 = vst [vmem:[%s186 + $0x8] sm:$0xff] %v1350
        %1800 = vst.msk [vmem:[%s186 + $0x10] sm:$0xff] %vm705, %v1795
        %s1801 = sand.u32 %s96, 1
        %s1802 = scalar_lea.sflag [#allocation4], %s1801
        %s1803 = sand.u32 %s96, 1
        %s1804 = smul.addr %s1803, 24
        %s1805 = scalar_lea.vmem [#allocation5], %s1804
        // Predicated region
        $region37: #{tpu_custom_call.1} parent=31 // pred_check
          %p1806 = pneg %p106
        $region38: #{tpu_custom_call.1} parent=31 // pred_check_branch
          %1808 = sbr.rel (%p1806) target = $region40
        $region39: #{tpu_custom_call.1} parent=31 // pred_region
          %s1810 = ssub.s32 384, 384
          %1811 = vsyncadd %s1802, %s1810
          %s1812 = smul.addr %s20, 3
          %s1813 = smul.addr %s1812, 128
          %s1814 = scalar_lea.hbm %s3, %s1813
          %s1816 = sshll.u32 %s1805, 4
          %s1817 = int_to_ptr.vmem [resolvable:$true] %s1816
          %1819 = dma.vmem_to_hbm [thread:$0]  %s1817, 384, %s1814, %s1802
        $region40: #{tpu_custom_call.1} parent=31 // pred_fallthru
          _
      $region32: #{tpu_custom_call.1} parent=5 // pred_fallthru
        _
      %p1820 = scmp.le.s32.totalorder 2, %s15
      // Predicated region
      $region41: #{tpu_custom_call.1} parent=5 // pred_check
        %p1821 = pneg %p1820
      $region42: #{tpu_custom_call.1} parent=5 // pred_check_branch
        %1823 = sbr.rel (%p1821) target = $region44
      $region43: #{tpu_custom_call.1} parent=5 // pred_region
        %s1824 = ssub.s32 %s15, 2
        // Predicated region
        $region45: #{tpu_custom_call.1} parent=43 // pred_check
          %p1825 = pneg %p112
        $region46: #{tpu_custom_call.1} parent=43 // pred_check_branch
          %1827 = sbr.rel (%p1825) target = $region48
        $region47: #{tpu_custom_call.1} parent=43 // pred_region
          %s1828 = sand.u32 %s97, 1
          %s1829 = scalar_lea.sflag [#allocation4], %s1828
          %s1830 = sand.u32 %s97, 1
          %s1831 = smul.addr %s1830, 24
          %s1832 = scalar_lea.vmem [#allocation5], %s1831
          %1833 = dma.done %s1829, 384
        $region48: #{tpu_custom_call.1} parent=43 // pred_fallthru
          _
      $region44: #{tpu_custom_call.1} parent=5 // pred_fallthru
        _
    $region6: #{tpu_custom_call.1} parent=1 // loop_footer
      %s19 = sadd.s32 1, %s15
    $region7: #{tpu_custom_call.1} parent=1 // loop_footer_branch
      %14 = sbr.rel target = $region3
    $region8: #{tpu_custom_call.1} parent=1 // loop_exit
      _
    %1834 = vsyncpa [#allocation3], 1
    %s1835 = scalar_lea.sflag [#allocation3], 1
    %1836 = vsyncpa %s1835, 1
    %1837 = vsyncpa [#allocation4], 1
    %s1838 = scalar_lea.sflag [#allocation4], 1
    %1839 = vsyncpa %s1838, 1

</llo_original>
